<compile_context>
chip_gen: v7x
topology: tpu7x:2x2x1
jax: 0.10.0
libtpu: 0.0.40
codegen_flags: <defaults>
</compile_context>

<pallas_src>
import jax
import jax.numpy as jnp
from jax.experimental import pallas as pl
from jax.experimental.pallas import tpu as pltpu  # noqa: F401  (kept for TPU-specific params if needed)


def _fused_add_relu_conv1x1_kernel(x1_ref, x2_ref, w_ref, o_ref):
    # x1_ref, x2_ref: (N, Cin, HW) f32, fully resident in VMEM (no pipelining).
    # w_ref:          (Cout, Cin) f32, loaded once, resident for all images.
    # o_ref:          (N, HW, Cout) f32 — channels on the lane axis -> lane-dense stores.
    n_imgs = x1_ref.shape[0]

    # One in-kernel XLU transpose of the weight, reused for every image.
    w_t = w_ref[...].T                                            # (Cin, Cout)

    for n in range(n_imgs):                                       # tiny static batch, unrolled
        # add + ReLU on the VPU.
        s = jnp.maximum(x1_ref[n] + x2_ref[n], 0.0)               # (Cin, HW)
        # 1x1 conv == (HW, Cin) @ (Cin, Cout) on the MXU: Cout=440 fills the result
        # columns (vs. 49 before) and the store into o_ref is lane-dense.
        o_ref[n] = jnp.dot(
            s.T, w_t, preferred_element_type=jnp.float32
        ).astype(o_ref.dtype)


def add_relu_conv1x1(x171, x185, weight, *, channels_last_out=False):
    """Fused x188 = conv1x1(relu(x171 + x185)).

    x171, x185: (N, Cin, H, W) f32.   weight: (Cout, Cin, 1, 1) f32 (bias-free).
    Returns NCHW (N, Cout, H, W) by default; NHWC (N, H, W, Cout) zero-copy if
    channels_last_out=True.
    """
    N, Cin, H, W = x171.shape
    Cout = weight.shape[0]
    HW = H * W

    # View-only reshapes — no data movement, no XLA-side transposes of inputs/weight.
    a = x171.reshape(N, Cin, HW)
    b = x185.reshape(N, Cin, HW)
    w = weight.reshape(Cout, Cin)

    cost = pl.CostEstimate(
        flops=2 * N * Cout * Cin * HW,
        transcendentals=0,
        bytes_accessed=(2 * N * Cin * HW + Cout * Cin + N * HW * Cout) * 4,
    )

    # Single invocation, no grid: every operand is a whole-array VMEM block.
    out_cl = pl.pallas_call(
        _fused_add_relu_conv1x1_kernel,
        out_shape=jax.ShapeDtypeStruct((N, HW, Cout), jnp.float32),
        cost_estimate=cost,
    )(a, b, w)

    if channels_last_out:
        # Zero-copy: (N, HW, Cout) -> (N, H, W, Cout).
        return out_cl.reshape(N, H, W, Cout)

    # NCHW parity with the PyTorch module: one tiny output transpose (~172 KB here).
    return jnp.transpose(out_cl, (0, 2, 1)).reshape(N, Cout, H, W)


if __name__ == "__main__":
    N, C, H, W = 2, 440, 7, 7   # channel count fixed by the module's Conv2d(440, 440, 1)

    key = jax.random.PRNGKey(0)
    k1, k2, k3 = jax.random.split(key, 3)
    x171 = jax.random.normal(k1, (N, C, H, W), dtype=jnp.float32)
    x185 = jax.random.normal(k2, (N, C, H, W), dtype=jnp.float32)
    # Deterministic weight init (Conv2d default-style uniform scale).
    bound = 1.0 / (C ** 0.5)
    weight = jax.random.uniform(k3, (C, C, 1, 1), dtype=jnp.float32,
                                minval=-bound, maxval=bound)

    out = jax.block_until_ready(add_relu_conv1x1(x171, x185, weight))

    # Reference in plain JAX (same default matmul precision as the kernel).
    s = jnp.maximum(x171 + x185, 0.0)
    ref = jnp.einsum("nchw,oc->nohw", s, weight.reshape(C, C))
    assert out.shape == (N, C, H, W)
    assert jnp.allclose(out, ref, atol=2e-4, rtol=2e-4), float(jnp.max(jnp.abs(out - ref)))

    print("KERNEL_OK")
</pallas_src>

<mosaic_0001>
module attributes {stable_mosaic.version = 11 : i64} {
  func.func @_fused_add_relu_conv1x1_kernel(%arg0: memref<2x440x49xf32, #tpu.memory_space<vmem>>, %arg1: memref<2x440x49xf32, #tpu.memory_space<vmem>>, %arg2: memref<440x440xf32, #tpu.memory_space<vmem>>, %arg3: memref<2x49x440xf32, #tpu.memory_space<vmem>>) attributes {dimension_semantics = [], scalar_prefetch = 0 : i64, scratch_operands = 0 : i64, tpu.core_type = #tpu.core_type<tc>} {
    %c0 = arith.constant 0 : index
    %c0_0 = arith.constant 0 : index
    %0 = vector.load %arg2[%c0, %c0_0] : memref<440x440xf32, #tpu.memory_space<vmem>>, vector<440x440xf32>
    %1 = tpu.transpose %0, [1, 0] : vector<440x440xf32> -> vector<440x440xf32>
    %c0_1 = arith.constant 0 : index
    %c0_2 = arith.constant 0 : index
    %c0_3 = arith.constant 0 : index
    %2 = vector.load %arg0[%c0_1, %c0_2, %c0_3] : memref<2x440x49xf32, #tpu.memory_space<vmem>>, vector<1x440x49xf32>
    %3 = vector.shape_cast %2 : vector<1x440x49xf32> to vector<440x49xf32>
    %c0_4 = arith.constant 0 : index
    %c0_5 = arith.constant 0 : index
    %c0_6 = arith.constant 0 : index
    %4 = vector.load %arg1[%c0_4, %c0_5, %c0_6] : memref<2x440x49xf32, #tpu.memory_space<vmem>>, vector<1x440x49xf32>
    %5 = vector.shape_cast %4 : vector<1x440x49xf32> to vector<440x49xf32>
    %6 = arith.addf %3, %5 : vector<440x49xf32>
    %cst = arith.constant 0.000000e+00 : f32
    %7 = vector.broadcast %cst : f32 to vector<440x49xf32>
    %8 = arith.maximumf %6, %7 : vector<440x49xf32>
    %9 = tpu.transpose %8, [1, 0] : vector<440x49xf32> -> vector<49x440xf32>
    %cst_7 = arith.constant dense<0.000000e+00> : vector<49x440xf32>
    %10 = tpu.matmul %9, %1, %cst_7 {dimension_numbers = #tpu.dot_dimension_numbers<[1], [0], [0], [1], [0, 0, 1, 1], [], []>} : vector<49x440xf32>, vector<440x440xf32>, vector<49x440xf32> -> vector<49x440xf32>
    %c0_8 = arith.constant 0 : index
    %c0_9 = arith.constant 0 : index
    %c0_10 = arith.constant 0 : index
    %11 = vector.load %arg3[%c0_8, %c0_9, %c0_10] : memref<2x49x440xf32, #tpu.memory_space<vmem>>, vector<1x49x440xf32>
    %12 = vector.shape_cast %11 : vector<1x49x440xf32> to vector<49x440xf32>
    %13 = vector.shape_cast %10 : vector<49x440xf32> to vector<1x49x440xf32>
    tpu.vector_store %arg3[%c0_8, %c0_9, %c0_10], %13 {strides = array<i32>} : memref<2x49x440xf32, #tpu.memory_space<vmem>>, vector<1x49x440xf32>,
    %c1 = arith.constant 1 : index
    %c0_11 = arith.constant 0 : index
    %c0_12 = arith.constant 0 : index
    %14 = vector.load %arg0[%c1, %c0_11, %c0_12] : memref<2x440x49xf32, #tpu.memory_space<vmem>>, vector<1x440x49xf32>
    %15 = vector.shape_cast %14 : vector<1x440x49xf32> to vector<440x49xf32>
    %c1_13 = arith.constant 1 : index
    %c0_14 = arith.constant 0 : index
    %c0_15 = arith.constant 0 : index
    %16 = vector.load %arg1[%c1_13, %c0_14, %c0_15] : memref<2x440x49xf32, #tpu.memory_space<vmem>>, vector<1x440x49xf32>
    %17 = vector.shape_cast %16 : vector<1x440x49xf32> to vector<440x49xf32>
    %18 = arith.addf %15, %17 : vector<440x49xf32>
    %cst_16 = arith.constant 0.000000e+00 : f32
    %19 = vector.broadcast %cst_16 : f32 to vector<440x49xf32>
    %20 = arith.maximumf %18, %19 : vector<440x49xf32>
    %21 = tpu.transpose %20, [1, 0] : vector<440x49xf32> -> vector<49x440xf32>
    %cst_17 = arith.constant dense<0.000000e+00> : vector<49x440xf32>
    %22 = tpu.matmul %21, %1, %cst_17 {dimension_numbers = #tpu.dot_dimension_numbers<[1], [0], [0], [1], [0, 0, 1, 1], [], []>} : vector<49x440xf32>, vector<440x440xf32>, vector<49x440xf32> -> vector<49x440xf32>
    %c1_18 = arith.constant 1 : index
    %c0_19 = arith.constant 0 : index
    %c0_20 = arith.constant 0 : index
    %23 = vector.load %arg3[%c1_18, %c0_19, %c0_20] : memref<2x49x440xf32, #tpu.memory_space<vmem>>, vector<1x49x440xf32>
    %24 = vector.shape_cast %23 : vector<1x49x440xf32> to vector<49x440xf32>
    %25 = vector.shape_cast %22 : vector<49x440xf32> to vector<1x49x440xf32>
    tpu.vector_store %arg3[%c1_18, %c0_19, %c0_20], %25 {strides = array<i32>} : memref<2x49x440xf32, #tpu.memory_space<vmem>>, vector<1x49x440xf32>,
    return
  }
}

</mosaic_0001>

<llo_original>
// kernel: tpu_custom_call.1
$region0: #{tpu_custom_call.1}
  #allocation0 [shape = 'u32[]', space=smem, size = 0x4, offset = 0x4, fixed_abs, tag = 'smem constant byte address 0x4 - core index']
  #allocation1 [shape = 'u32[144,128]{1,0:T(1,128)}', space=vmem, size = 0x12000, scoped, tag = 'internal scratch']
  %s0 = inlined_call_operand.vmem [shape: f32[2,440,49], index: 0, kind: input, shape index: {}]
  %s1 = inlined_call_operand.vmem [shape: f32[2,440,49], index: 1, kind: input, shape index: {}]
  %s2 = inlined_call_operand.vmem [shape: f32[440,440], index: 2, kind: input, shape index: {}]
  %s3 = inlined_call_operand.vmem [shape: f32[2,49,440], index: 3, kind: output, shape index: {}]
  %s4 = sld [smem:[#allocation0]]
  $region22: #{tpu_custom_call.1} parent=0
    _
  %s6 = ssub.s32 1, %s4
  %s7 = scalar_select 0, %s6, %s4
  // Predicated region
  $region2: #{tpu_custom_call.1} parent=0 // pred_check
    _
  $region3: #{tpu_custom_call.1} parent=0 // pred_check_branch
    %9 = sbr.rel (0) target = $region5
  $region4: #{tpu_custom_call.1} parent=0 // pred_region
    _
  $region5: #{tpu_custom_call.1} parent=0 // pred_fallthru
    _
  // Predicated region
  $region6: #{tpu_custom_call.1} parent=0 // pred_check
    _
  $region7: #{tpu_custom_call.1} parent=0 // pred_check_branch
    %11 = sbr.rel (0) target = $region9
  $region8: #{tpu_custom_call.1} parent=0 // pred_region
    _
  $region9: #{tpu_custom_call.1} parent=0 // pred_fallthru
    _
  // Predicated region
  $region10: #{tpu_custom_call.1} parent=0 // pred_check
    _
  $region11: #{tpu_custom_call.1} parent=0 // pred_check_branch
    %13 = sbr.rel (0) target = $region13
  $region12: #{tpu_custom_call.1} parent=0 // pred_region
    _
  $region13: #{tpu_custom_call.1} parent=0 // pred_fallthru
    _
  %v14 = vld [vmem:[%s2] sm:$0xff]
  %v15 = vld [vmem:[%s2 + $0x8] sm:$0xff]
  %v16 = vld [vmem:[%s2 + $0x10] sm:$0xff]
  %v17 = vld [vmem:[%s2 + $0x18] sm:$0xff]
  %v18 = vld [vmem:[%s2 + $0x20] sm:$0xff]
  %v19 = vld [vmem:[%s2 + $0x28] sm:$0xff]
  %v20 = vld [vmem:[%s2 + $0x30] sm:$0xff]
  %v21 = vld [vmem:[%s2 + $0x38] sm:$0xff]
  %v22 = vld [vmem:[%s2 + $0x40] sm:$0xff]
  %v23 = vld [vmem:[%s2 + $0x48] sm:$0xff]
  %v24 = vld [vmem:[%s2 + $0x50] sm:$0xff]
  %v25 = vld [vmem:[%s2 + $0x58] sm:$0xff]
  %v26 = vld [vmem:[%s2 + $0x60] sm:$0xff]
  %v27 = vld [vmem:[%s2 + $0x68] sm:$0xff]
  %v28 = vld [vmem:[%s2 + $0x70] sm:$0xff]
  %v29 = vld [vmem:[%s2 + $0x78] sm:$0xff]
  %v30 = vld [vmem:[%s2 + $0x80] sm:$0xff]
  %v31 = vld [vmem:[%s2 + $0x88] sm:$0xff]
  %v32 = vld [vmem:[%s2 + $0x90] sm:$0xff]
  %v33 = vld [vmem:[%s2 + $0x98] sm:$0xff]
  %v34 = vld [vmem:[%s2 + $0xa0] sm:$0xff]
  %v35 = vld [vmem:[%s2 + $0xa8] sm:$0xff]
  %v36 = vld [vmem:[%s2 + $0xb0] sm:$0xff]
  %v37 = vld [vmem:[%s2 + $0xb8] sm:$0xff]
  %v38 = vld [vmem:[%s2 + $0xc0] sm:$0xff]
  %v39 = vld [vmem:[%s2 + $0xc8] sm:$0xff]
  %v40 = vld [vmem:[%s2 + $0xd0] sm:$0xff]
  %v41 = vld [vmem:[%s2 + $0xd8] sm:$0xff]
  %v42 = vld [vmem:[%s2 + $0xe0] sm:$0xff]
  %v43 = vld [vmem:[%s2 + $0xe8] sm:$0xff]
  %v44 = vld [vmem:[%s2 + $0xf0] sm:$0xff]
  %v45 = vld [vmem:[%s2 + $0xf8] sm:$0xff]
  %v46 = vld [vmem:[%s2 + $0x100] sm:$0xff]
  %v47 = vld [vmem:[%s2 + $0x108] sm:$0xff]
  %v48 = vld [vmem:[%s2 + $0x110] sm:$0xff]
  %v49 = vld [vmem:[%s2 + $0x118] sm:$0xff]
  %v50 = vld [vmem:[%s2 + $0x120] sm:$0xff]
  %v51 = vld [vmem:[%s2 + $0x128] sm:$0xff]
  %v52 = vld [vmem:[%s2 + $0x130] sm:$0xff]
  %v53 = vld [vmem:[%s2 + $0x138] sm:$0xff]
  %v54 = vld [vmem:[%s2 + $0x140] sm:$0xff]
  %v55 = vld [vmem:[%s2 + $0x148] sm:$0xff]
  %v56 = vld [vmem:[%s2 + $0x150] sm:$0xff]
  %v57 = vld [vmem:[%s2 + $0x158] sm:$0xff]
  %v58 = vld [vmem:[%s2 + $0x160] sm:$0xff]
  %v59 = vld [vmem:[%s2 + $0x168] sm:$0xff]
  %v60 = vld [vmem:[%s2 + $0x170] sm:$0xff]
  %v61 = vld [vmem:[%s2 + $0x178] sm:$0xff]
  %v62 = vld [vmem:[%s2 + $0x180] sm:$0xff]
  %v63 = vld [vmem:[%s2 + $0x188] sm:$0xff]
  %v64 = vld [vmem:[%s2 + $0x190] sm:$0xff]
  %v65 = vld [vmem:[%s2 + $0x198] sm:$0xff]
  %v66 = vld [vmem:[%s2 + $0x1a0] sm:$0xff]
  %v67 = vld [vmem:[%s2 + $0x1a8] sm:$0xff]
  %v68 = vld [vmem:[%s2 + $0x1b0] sm:$0xff]
  %v69 = vld [vmem:[%s2 + $0x1b8] sm:$0xff]
  %v70 = vld [vmem:[%s2 + $0x1c0] sm:$0xff]
  %v71 = vld [vmem:[%s2 + $0x1c8] sm:$0xff]
  %v72 = vld [vmem:[%s2 + $0x1d0] sm:$0xff]
  %v73 = vld [vmem:[%s2 + $0x1d8] sm:$0xff]
  %v74 = vld [vmem:[%s2 + $0x1e0] sm:$0xff]
  %v75 = vld [vmem:[%s2 + $0x1e8] sm:$0xff]
  %v76 = vld [vmem:[%s2 + $0x1f0] sm:$0xff]
  %v77 = vld [vmem:[%s2 + $0x1f8] sm:$0xff]
  %v78 = vld [vmem:[%s2 + $0x200] sm:$0xff]
  %v79 = vld [vmem:[%s2 + $0x208] sm:$0xff]
  %v80 = vld [vmem:[%s2 + $0x210] sm:$0xff]
  %v81 = vld [vmem:[%s2 + $0x218] sm:$0xff]
  %v82 = vld [vmem:[%s2 + $0x220] sm:$0xff]
  %v83 = vld [vmem:[%s2 + $0x228] sm:$0xff]
  %v84 = vld [vmem:[%s2 + $0x230] sm:$0xff]
  %v85 = vld [vmem:[%s2 + $0x238] sm:$0xff]
  %v86 = vld [vmem:[%s2 + $0x240] sm:$0xff]
  %v87 = vld [vmem:[%s2 + $0x248] sm:$0xff]
  %v88 = vld [vmem:[%s2 + $0x250] sm:$0xff]
  %v89 = vld [vmem:[%s2 + $0x258] sm:$0xff]
  %v90 = vld [vmem:[%s2 + $0x260] sm:$0xff]
  %v91 = vld [vmem:[%s2 + $0x268] sm:$0xff]
  %v92 = vld [vmem:[%s2 + $0x270] sm:$0xff]
  %v93 = vld [vmem:[%s2 + $0x278] sm:$0xff]
  %v94 = vld [vmem:[%s2 + $0x280] sm:$0xff]
  %v95 = vld [vmem:[%s2 + $0x288] sm:$0xff]
  %v96 = vld [vmem:[%s2 + $0x290] sm:$0xff]
  %v97 = vld [vmem:[%s2 + $0x298] sm:$0xff]
  %v98 = vld [vmem:[%s2 + $0x2a0] sm:$0xff]
  %v99 = vld [vmem:[%s2 + $0x2a8] sm:$0xff]
  %v100 = vld [vmem:[%s2 + $0x2b0] sm:$0xff]
  %v101 = vld [vmem:[%s2 + $0x2b8] sm:$0xff]
  %v102 = vld [vmem:[%s2 + $0x2c0] sm:$0xff]
  %v103 = vld [vmem:[%s2 + $0x2c8] sm:$0xff]
  %v104 = vld [vmem:[%s2 + $0x2d0] sm:$0xff]
  %v105 = vld [vmem:[%s2 + $0x2d8] sm:$0xff]
  %v106 = vld [vmem:[%s2 + $0x2e0] sm:$0xff]
  %v107 = vld [vmem:[%s2 + $0x2e8] sm:$0xff]
  %v108 = vld [vmem:[%s2 + $0x2f0] sm:$0xff]
  %v109 = vld [vmem:[%s2 + $0x2f8] sm:$0xff]
  %v110 = vld [vmem:[%s2 + $0x300] sm:$0xff]
  %v111 = vld [vmem:[%s2 + $0x308] sm:$0xff]
  %v112 = vld [vmem:[%s2 + $0x310] sm:$0xff]
  %v113 = vld [vmem:[%s2 + $0x318] sm:$0xff]
  %v114 = vld [vmem:[%s2 + $0x320] sm:$0xff]
  %v115 = vld [vmem:[%s2 + $0x328] sm:$0xff]
  %v116 = vld [vmem:[%s2 + $0x330] sm:$0xff]
  %v117 = vld [vmem:[%s2 + $0x338] sm:$0xff]
  %v118 = vld [vmem:[%s2 + $0x340] sm:$0xff]
  %v119 = vld [vmem:[%s2 + $0x348] sm:$0xff]
  %v120 = vld [vmem:[%s2 + $0x350] sm:$0xff]
  %v121 = vld [vmem:[%s2 + $0x358] sm:$0xff]
  %v122 = vld [vmem:[%s2 + $0x360] sm:$0xff]
  %v123 = vld [vmem:[%s2 + $0x368] sm:$0xff]
  %v124 = vld [vmem:[%s2 + $0x370] sm:$0xff]
  %v125 = vld [vmem:[%s2 + $0x378] sm:$0xff]
  %v126 = vld [vmem:[%s2 + $0x380] sm:$0xff]
  %v127 = vld [vmem:[%s2 + $0x388] sm:$0xff]
  %v128 = vld [vmem:[%s2 + $0x390] sm:$0xff]
  %v129 = vld [vmem:[%s2 + $0x398] sm:$0xff]
  %v130 = vld [vmem:[%s2 + $0x3a0] sm:$0xff]
  %v131 = vld [vmem:[%s2 + $0x3a8] sm:$0xff]
  %v132 = vld [vmem:[%s2 + $0x3b0] sm:$0xff]
  %v133 = vld [vmem:[%s2 + $0x3b8] sm:$0xff]
  %v134 = vld [vmem:[%s2 + $0x3c0] sm:$0xff]
  %v135 = vld [vmem:[%s2 + $0x3c8] sm:$0xff]
  %v136 = vld [vmem:[%s2 + $0x3d0] sm:$0xff]
  %v137 = vld [vmem:[%s2 + $0x3d8] sm:$0xff]
  %v138 = vld [vmem:[%s2 + $0x3e0] sm:$0xff]
  %v139 = vld [vmem:[%s2 + $0x3e8] sm:$0xff]
  %v140 = vld [vmem:[%s2 + $0x3f0] sm:$0xff]
  %v141 = vld [vmem:[%s2 + $0x3f8] sm:$0xff]
  %v142 = vld [vmem:[%s2 + $0x400] sm:$0xff]
  %v143 = vld [vmem:[%s2 + $0x408] sm:$0xff]
  %v144 = vld [vmem:[%s2 + $0x410] sm:$0xff]
  %v145 = vld [vmem:[%s2 + $0x418] sm:$0xff]
  %v146 = vld [vmem:[%s2 + $0x420] sm:$0xff]
  %v147 = vld [vmem:[%s2 + $0x428] sm:$0xff]
  %v148 = vld [vmem:[%s2 + $0x430] sm:$0xff]
  %v149 = vld [vmem:[%s2 + $0x438] sm:$0xff]
  %v150 = vld [vmem:[%s2 + $0x440] sm:$0xff]
  %v151 = vld [vmem:[%s2 + $0x448] sm:$0xff]
  %v152 = vld [vmem:[%s2 + $0x450] sm:$0xff]
  %v153 = vld [vmem:[%s2 + $0x458] sm:$0xff]
  %v154 = vld [vmem:[%s2 + $0x460] sm:$0xff]
  %v155 = vld [vmem:[%s2 + $0x468] sm:$0xff]
  %v156 = vld [vmem:[%s2 + $0x470] sm:$0xff]
  %v157 = vld [vmem:[%s2 + $0x478] sm:$0xff]
  %v158 = vld [vmem:[%s2 + $0x480] sm:$0xff]
  %v159 = vld [vmem:[%s2 + $0x488] sm:$0xff]
  %v160 = vld [vmem:[%s2 + $0x490] sm:$0xff]
  %v161 = vld [vmem:[%s2 + $0x498] sm:$0xff]
  %v162 = vld [vmem:[%s2 + $0x4a0] sm:$0xff]
  %v163 = vld [vmem:[%s2 + $0x4a8] sm:$0xff]
  %v164 = vld [vmem:[%s2 + $0x4b0] sm:$0xff]
  %v165 = vld [vmem:[%s2 + $0x4b8] sm:$0xff]
  %v166 = vld [vmem:[%s2 + $0x4c0] sm:$0xff]
  %v167 = vld [vmem:[%s2 + $0x4c8] sm:$0xff]
  %v168 = vld [vmem:[%s2 + $0x4d0] sm:$0xff]
  %v169 = vld [vmem:[%s2 + $0x4d8] sm:$0xff]
  %v170 = vld [vmem:[%s2 + $0x4e0] sm:$0xff]
  %v171 = vld [vmem:[%s2 + $0x4e8] sm:$0xff]
  %v172 = vld [vmem:[%s2 + $0x4f0] sm:$0xff]
  %v173 = vld [vmem:[%s2 + $0x4f8] sm:$0xff]
  %v174 = vld [vmem:[%s2 + $0x500] sm:$0xff]
  %v175 = vld [vmem:[%s2 + $0x508] sm:$0xff]
  %v176 = vld [vmem:[%s2 + $0x510] sm:$0xff]
  %v177 = vld [vmem:[%s2 + $0x518] sm:$0xff]
  %v178 = vld [vmem:[%s2 + $0x520] sm:$0xff]
  %v179 = vld [vmem:[%s2 + $0x528] sm:$0xff]
  %v180 = vld [vmem:[%s2 + $0x530] sm:$0xff]
  %v181 = vld [vmem:[%s2 + $0x538] sm:$0xff]
  %v182 = vld [vmem:[%s2 + $0x540] sm:$0xff]
  %v183 = vld [vmem:[%s2 + $0x548] sm:$0xff]
  %v184 = vld [vmem:[%s2 + $0x550] sm:$0xff]
  %v185 = vld [vmem:[%s2 + $0x558] sm:$0xff]
  %v186 = vld [vmem:[%s2 + $0x560] sm:$0xff]
  %v187 = vld [vmem:[%s2 + $0x568] sm:$0xff]
  %v188 = vld [vmem:[%s2 + $0x570] sm:$0xff]
  %v189 = vld [vmem:[%s2 + $0x578] sm:$0xff]
  %v190 = vld [vmem:[%s2 + $0x580] sm:$0xff]
  %v191 = vld [vmem:[%s2 + $0x588] sm:$0xff]
  %v192 = vld [vmem:[%s2 + $0x590] sm:$0xff]
  %v193 = vld [vmem:[%s2 + $0x598] sm:$0xff]
  %v194 = vld [vmem:[%s2 + $0x5a0] sm:$0xff]
  %v195 = vld [vmem:[%s2 + $0x5a8] sm:$0xff]
  %v196 = vld [vmem:[%s2 + $0x5b0] sm:$0xff]
  %v197 = vld [vmem:[%s2 + $0x5b8] sm:$0xff]
  %v198 = vld [vmem:[%s2 + $0x5c0] sm:$0xff]
  %v199 = vld [vmem:[%s2 + $0x5c8] sm:$0xff]
  %v200 = vld [vmem:[%s2 + $0x5d0] sm:$0xff]
  %v201 = vld [vmem:[%s2 + $0x5d8] sm:$0xff]
  %v202 = vld [vmem:[%s2 + $0x5e0] sm:$0xff]
  %v203 = vld [vmem:[%s2 + $0x5e8] sm:$0xff]
  %v204 = vld [vmem:[%s2 + $0x5f0] sm:$0xff]
  %v205 = vld [vmem:[%s2 + $0x5f8] sm:$0xff]
  %v206 = vld [vmem:[%s2 + $0x600] sm:$0xff]
  %v207 = vld [vmem:[%s2 + $0x608] sm:$0xff]
  %v208 = vld [vmem:[%s2 + $0x610] sm:$0xff]
  %v209 = vld [vmem:[%s2 + $0x618] sm:$0xff]
  %v210 = vld [vmem:[%s2 + $0x620] sm:$0xff]
  %v211 = vld [vmem:[%s2 + $0x628] sm:$0xff]
  %v212 = vld [vmem:[%s2 + $0x630] sm:$0xff]
  %v213 = vld [vmem:[%s2 + $0x638] sm:$0xff]
  %v214 = vld [vmem:[%s2 + $0x640] sm:$0xff]
  %v215 = vld [vmem:[%s2 + $0x648] sm:$0xff]
  %v216 = vld [vmem:[%s2 + $0x650] sm:$0xff]
  %v217 = vld [vmem:[%s2 + $0x658] sm:$0xff]
  %v218 = vld [vmem:[%s2 + $0x660] sm:$0xff]
  %v219 = vld [vmem:[%s2 + $0x668] sm:$0xff]
  %v220 = vld [vmem:[%s2 + $0x670] sm:$0xff]
  %v221 = vld [vmem:[%s2 + $0x678] sm:$0xff]
  %v222 = vld [vmem:[%s2 + $0x680] sm:$0xff]
  %v223 = vld [vmem:[%s2 + $0x688] sm:$0xff]
  %v224 = vld [vmem:[%s2 + $0x690] sm:$0xff]
  %v225 = vld [vmem:[%s2 + $0x698] sm:$0xff]
  %v226 = vld [vmem:[%s2 + $0x6a0] sm:$0xff]
  %v227 = vld [vmem:[%s2 + $0x6a8] sm:$0xff]
  %v228 = vld [vmem:[%s2 + $0x6b0] sm:$0xff]
  %v229 = vld [vmem:[%s2 + $0x6b8] sm:$0xff]
  %v230 = vld [vmem:[%s2 + $0x6c0] sm:$0xff]
  %v231 = vld [vmem:[%s2 + $0x6c8] sm:$0xff]
  %v232 = vld [vmem:[%s2 + $0x6d0] sm:$0xff]
  %v233 = vld [vmem:[%s2 + $0x6d8] sm:$0xff]
  %v234 = vld [vmem:[%s0] sm:$0xff]
  %v235 = vld [vmem:[%s0 + $0x8] sm:$0xff]
  %v236 = vld [vmem:[%s0 + $0x10] sm:$0xff]
  %v237 = vld [vmem:[%s0 + $0x18] sm:$0xff]
  %v238 = vld [vmem:[%s0 + $0x20] sm:$0xff]
  %v239 = vld [vmem:[%s0 + $0x28] sm:$0xff]
  %v240 = vld [vmem:[%s0 + $0x30] sm:$0xff]
  %v241 = vld [vmem:[%s0 + $0x38] sm:$0xff]
  %v242 = vld [vmem:[%s0 + $0x40] sm:$0xff]
  %v243 = vld [vmem:[%s0 + $0x48] sm:$0xff]
  %v244 = vld [vmem:[%s0 + $0x50] sm:$0xff]
  %v245 = vld [vmem:[%s0 + $0x58] sm:$0xff]
  %v246 = vld [vmem:[%s0 + $0x60] sm:$0xff]
  %v247 = vld [vmem:[%s0 + $0x68] sm:$0xff]
  %v248 = vld [vmem:[%s0 + $0x70] sm:$0xff]
  %v249 = vld [vmem:[%s0 + $0x78] sm:$0xff]
  %v250 = vld [vmem:[%s0 + $0x80] sm:$0xff]
  %v251 = vld [vmem:[%s0 + $0x88] sm:$0xff]
  %v252 = vld [vmem:[%s0 + $0x90] sm:$0xff]
  %v253 = vld [vmem:[%s0 + $0x98] sm:$0xff]
  %v254 = vld [vmem:[%s0 + $0xa0] sm:$0xff]
  %v255 = vld [vmem:[%s0 + $0xa8] sm:$0xff]
  %v256 = vld [vmem:[%s0 + $0xb0] sm:$0xff]
  %v257 = vld [vmem:[%s0 + $0xb8] sm:$0xff]
  %v258 = vld [vmem:[%s0 + $0xc0] sm:$0xff]
  %v259 = vld [vmem:[%s0 + $0xc8] sm:$0xff]
  %v260 = vld [vmem:[%s0 + $0xd0] sm:$0xff]
  %v261 = vld [vmem:[%s0 + $0xd8] sm:$0xff]
  %v262 = vld [vmem:[%s0 + $0xe0] sm:$0xff]
  %v263 = vld [vmem:[%s0 + $0xe8] sm:$0xff]
  %v264 = vld [vmem:[%s0 + $0xf0] sm:$0xff]
  %v265 = vld [vmem:[%s0 + $0xf8] sm:$0xff]
  %v266 = vld [vmem:[%s0 + $0x100] sm:$0xff]
  %v267 = vld [vmem:[%s0 + $0x108] sm:$0xff]
  %v268 = vld [vmem:[%s0 + $0x110] sm:$0xff]
  %v269 = vld [vmem:[%s0 + $0x118] sm:$0xff]
  %v270 = vld [vmem:[%s0 + $0x120] sm:$0xff]
  %v271 = vld [vmem:[%s0 + $0x128] sm:$0xff]
  %v272 = vld [vmem:[%s0 + $0x130] sm:$0xff]
  %v273 = vld [vmem:[%s0 + $0x138] sm:$0xff]
  %v274 = vld [vmem:[%s0 + $0x140] sm:$0xff]
  %v275 = vld [vmem:[%s0 + $0x148] sm:$0xff]
  %v276 = vld [vmem:[%s0 + $0x150] sm:$0xff]
  %v277 = vld [vmem:[%s0 + $0x158] sm:$0xff]
  %v278 = vld [vmem:[%s0 + $0x160] sm:$0xff]
  %v279 = vld [vmem:[%s0 + $0x168] sm:$0xff]
  %v280 = vld [vmem:[%s0 + $0x170] sm:$0xff]
  %v281 = vld [vmem:[%s0 + $0x178] sm:$0xff]
  %v282 = vld [vmem:[%s0 + $0x180] sm:$0xff]
  %v283 = vld [vmem:[%s0 + $0x188] sm:$0xff]
  %v284 = vld [vmem:[%s0 + $0x190] sm:$0xff]
  %v285 = vld [vmem:[%s0 + $0x198] sm:$0xff]
  %v286 = vld [vmem:[%s0 + $0x1a0] sm:$0xff]
  %v287 = vld [vmem:[%s0 + $0x1a8] sm:$0xff]
  %v288 = vld [vmem:[%s0 + $0x1b0] sm:$0xff]
  %v289 = vld [vmem:[%s1] sm:$0xff]
  %v290 = vld [vmem:[%s1 + $0x8] sm:$0xff]
  %v291 = vld [vmem:[%s1 + $0x10] sm:$0xff]
  %v292 = vld [vmem:[%s1 + $0x18] sm:$0xff]
  %v293 = vld [vmem:[%s1 + $0x20] sm:$0xff]
  %v294 = vld [vmem:[%s1 + $0x28] sm:$0xff]
  %v295 = vld [vmem:[%s1 + $0x30] sm:$0xff]
  %v296 = vld [vmem:[%s1 + $0x38] sm:$0xff]
  %v297 = vld [vmem:[%s1 + $0x40] sm:$0xff]
  %v298 = vld [vmem:[%s1 + $0x48] sm:$0xff]
  %v299 = vld [vmem:[%s1 + $0x50] sm:$0xff]
  %v300 = vld [vmem:[%s1 + $0x58] sm:$0xff]
  %v301 = vld [vmem:[%s1 + $0x60] sm:$0xff]
  %v302 = vld [vmem:[%s1 + $0x68] sm:$0xff]
  %v303 = vld [vmem:[%s1 + $0x70] sm:$0xff]
  %v304 = vld [vmem:[%s1 + $0x78] sm:$0xff]
  %v305 = vld [vmem:[%s1 + $0x80] sm:$0xff]
  %v306 = vld [vmem:[%s1 + $0x88] sm:$0xff]
  %v307 = vld [vmem:[%s1 + $0x90] sm:$0xff]
  %v308 = vld [vmem:[%s1 + $0x98] sm:$0xff]
  %v309 = vld [vmem:[%s1 + $0xa0] sm:$0xff]
  %v310 = vld [vmem:[%s1 + $0xa8] sm:$0xff]
  %v311 = vld [vmem:[%s1 + $0xb0] sm:$0xff]
  %v312 = vld [vmem:[%s1 + $0xb8] sm:$0xff]
  %v313 = vld [vmem:[%s1 + $0xc0] sm:$0xff]
  %v314 = vld [vmem:[%s1 + $0xc8] sm:$0xff]
  %v315 = vld [vmem:[%s1 + $0xd0] sm:$0xff]
  %v316 = vld [vmem:[%s1 + $0xd8] sm:$0xff]
  %v317 = vld [vmem:[%s1 + $0xe0] sm:$0xff]
  %v318 = vld [vmem:[%s1 + $0xe8] sm:$0xff]
  %v319 = vld [vmem:[%s1 + $0xf0] sm:$0xff]
  %v320 = vld [vmem:[%s1 + $0xf8] sm:$0xff]
  %v321 = vld [vmem:[%s1 + $0x100] sm:$0xff]
  %v322 = vld [vmem:[%s1 + $0x108] sm:$0xff]
  %v323 = vld [vmem:[%s1 + $0x110] sm:$0xff]
  %v324 = vld [vmem:[%s1 + $0x118] sm:$0xff]
  %v325 = vld [vmem:[%s1 + $0x120] sm:$0xff]
  %v326 = vld [vmem:[%s1 + $0x128] sm:$0xff]
  %v327 = vld [vmem:[%s1 + $0x130] sm:$0xff]
  %v328 = vld [vmem:[%s1 + $0x138] sm:$0xff]
  %v329 = vld [vmem:[%s1 + $0x140] sm:$0xff]
  %v330 = vld [vmem:[%s1 + $0x148] sm:$0xff]
  %v331 = vld [vmem:[%s1 + $0x150] sm:$0xff]
  %v332 = vld [vmem:[%s1 + $0x158] sm:$0xff]
  %v333 = vld [vmem:[%s1 + $0x160] sm:$0xff]
  %v334 = vld [vmem:[%s1 + $0x168] sm:$0xff]
  %v335 = vld [vmem:[%s1 + $0x170] sm:$0xff]
  %v336 = vld [vmem:[%s1 + $0x178] sm:$0xff]
  %v337 = vld [vmem:[%s1 + $0x180] sm:$0xff]
  %v338 = vld [vmem:[%s1 + $0x188] sm:$0xff]
  %v339 = vld [vmem:[%s1 + $0x190] sm:$0xff]
  %v340 = vld [vmem:[%s1 + $0x198] sm:$0xff]
  %v341 = vld [vmem:[%s1 + $0x1a0] sm:$0xff]
  %v342 = vld [vmem:[%s1 + $0x1a8] sm:$0xff]
  %v343 = vld [vmem:[%s1 + $0x1b0] sm:$0xff]
  %v344 = vadd.f32 %v234, %v289
  %v345 = vadd.f32 %v235, %v290
  %v346 = vadd.f32 %v236, %v291
  %v347 = vadd.f32 %v237, %v292
  %v348 = vadd.f32 %v238, %v293
  %v349 = vadd.f32 %v239, %v294
  %v350 = vadd.f32 %v240, %v295
  %v351 = vadd.f32 %v241, %v296
  %v352 = vadd.f32 %v242, %v297
  %v353 = vadd.f32 %v243, %v298
  %v354 = vadd.f32 %v244, %v299
  %v355 = vadd.f32 %v245, %v300
  %v356 = vadd.f32 %v246, %v301
  %v357 = vadd.f32 %v247, %v302
  %v358 = vadd.f32 %v248, %v303
  %v359 = vadd.f32 %v249, %v304
  %v360 = vadd.f32 %v250, %v305
  %v361 = vadd.f32 %v251, %v306
  %v362 = vadd.f32 %v252, %v307
  %v363 = vadd.f32 %v253, %v308
  %v364 = vadd.f32 %v254, %v309
  %v365 = vadd.f32 %v255, %v310
  %v366 = vadd.f32 %v256, %v311
  %v367 = vadd.f32 %v257, %v312
  %v368 = vadd.f32 %v258, %v313
  %v369 = vadd.f32 %v259, %v314
  %v370 = vadd.f32 %v260, %v315
  %v371 = vadd.f32 %v261, %v316
  %v372 = vadd.f32 %v262, %v317
  %v373 = vadd.f32 %v263, %v318
  %v374 = vadd.f32 %v264, %v319
  %v375 = vadd.f32 %v265, %v320
  %v376 = vadd.f32 %v266, %v321
  %v377 = vadd.f32 %v267, %v322
  %v378 = vadd.f32 %v268, %v323
  %v379 = vadd.f32 %v269, %v324
  %v380 = vadd.f32 %v270, %v325
  %v381 = vadd.f32 %v271, %v326
  %v382 = vadd.f32 %v272, %v327
  %v383 = vadd.f32 %v273, %v328
  %v384 = vadd.f32 %v274, %v329
  %v385 = vadd.f32 %v275, %v330
  %v386 = vadd.f32 %v276, %v331
  %v387 = vadd.f32 %v277, %v332
  %v388 = vadd.f32 %v278, %v333
  %v389 = vadd.f32 %v279, %v334
  %v390 = vadd.f32 %v280, %v335
  %v391 = vadd.f32 %v281, %v336
  %v392 = vadd.f32 %v282, %v337
  %v393 = vadd.f32 %v283, %v338
  %v394 = vadd.f32 %v284, %v339
  %v395 = vadd.f32 %v285, %v340
  %v396 = vadd.f32 %v286, %v341
  %v397 = vadd.f32 %v287, %v342
  %v398 = vadd.f32 %v288, %v343
  %v399 = vmax.f32 %v344, 0.0
  %v400 = vmax.f32 %v345, 0.0
  %v401 = vmax.f32 %v346, 0.0
  %v402 = vmax.f32 %v347, 0.0
  %v403 = vmax.f32 %v348, 0.0
  %v404 = vmax.f32 %v349, 0.0
  %v405 = vmax.f32 %v350, 0.0
  %v406 = vmax.f32 %v351, 0.0
  %v407 = vmax.f32 %v352, 0.0
  %v408 = vmax.f32 %v353, 0.0
  %v409 = vmax.f32 %v354, 0.0
  %v410 = vmax.f32 %v355, 0.0
  %v411 = vmax.f32 %v356, 0.0
  %v412 = vmax.f32 %v357, 0.0
  %v413 = vmax.f32 %v358, 0.0
  %v414 = vmax.f32 %v359, 0.0
  %v415 = vmax.f32 %v360, 0.0
  %v416 = vmax.f32 %v361, 0.0
  %v417 = vmax.f32 %v362, 0.0
  %v418 = vmax.f32 %v363, 0.0
  %v419 = vmax.f32 %v364, 0.0
  %v420 = vmax.f32 %v365, 0.0
  %v421 = vmax.f32 %v366, 0.0
  %v422 = vmax.f32 %v367, 0.0
  %v423 = vmax.f32 %v368, 0.0
  %v424 = vmax.f32 %v369, 0.0
  %v425 = vmax.f32 %v370, 0.0
  %v426 = vmax.f32 %v371, 0.0
  %v427 = vmax.f32 %v372, 0.0
  %v428 = vmax.f32 %v373, 0.0
  %v429 = vmax.f32 %v374, 0.0
  %v430 = vmax.f32 %v375, 0.0
  %v431 = vmax.f32 %v376, 0.0
  %v432 = vmax.f32 %v377, 0.0
  %v433 = vmax.f32 %v378, 0.0
  %v434 = vmax.f32 %v379, 0.0
  %v435 = vmax.f32 %v380, 0.0
  %v436 = vmax.f32 %v381, 0.0
  %v437 = vmax.f32 %v382, 0.0
  %v438 = vmax.f32 %v383, 0.0
  %v439 = vmax.f32 %v384, 0.0
  %v440 = vmax.f32 %v385, 0.0
  %v441 = vmax.f32 %v386, 0.0
  %v442 = vmax.f32 %v387, 0.0
  %v443 = vmax.f32 %v388, 0.0
  %v444 = vmax.f32 %v389, 0.0
  %v445 = vmax.f32 %v390, 0.0
  %v446 = vmax.f32 %v391, 0.0
  %v447 = vmax.f32 %v392, 0.0
  %v448 = vmax.f32 %v393, 0.0
  %v449 = vmax.f32 %v394, 0.0
  %v450 = vmax.f32 %v395, 0.0
  %v451 = vmax.f32 %v396, 0.0
  %v452 = vmax.f32 %v397, 0.0
  %v453 = vmax.f32 %v398, 0.0
  %454 = vxpose.xlu0.b32.start [1/16] %v399, 128
  %455 = vxpose.xlu0.b32.cont [2/16] %v400, 128
  %456 = vxpose.xlu0.b32.cont [3/16] %v401, 128
  %457 = vxpose.xlu0.b32.cont [4/16] %v402, 128
  %458 = vxpose.xlu0.b32.cont [5/16] %v403, 128
  %459 = vxpose.xlu0.b32.cont [6/16] %v404, 128
  %460 = vxpose.xlu0.b32.cont [7/16] %v405, 128
  %461 = vxpose.xlu0.b32.cont [8/16] %v406, 128
  %462 = vxpose.xlu0.b32.cont [9/16] %v407, 128
  %463 = vxpose.xlu0.b32.cont [10/16] %v408, 128
  %464 = vxpose.xlu0.b32.cont [11/16] %v409, 128
  %465 = vxpose.xlu0.b32.cont [12/16] %v410, 128
  %466 = vxpose.xlu0.b32.cont [13/16] %v411, 128
  %467 = vxpose.xlu0.b32.cont [14/16] %v412, 128
  %468 = vxpose.xlu0.b32.cont [15/16] %v413, 128
  %469 = vxpose.xlu0.b32.end [16/16] %v414, 128
  %v470 = vpop.trf.xlu0
  %v471 = vpop.trf.xlu0
  %v472 = vpop.trf.xlu0
  %v473 = vpop.trf.xlu0
  %v474 = vpop.trf.xlu0
  %v475 = vpop.trf.xlu0
  %v476 = vpop.trf.xlu0
  %v477 = vpop.trf.xlu0
  %v478 = vpop.trf.xlu0
  %v479 = vpop.trf.xlu0
  %v480 = vpop.trf.xlu0
  %v481 = vpop.trf.xlu0
  %v482 = vpop.trf.xlu0
  %v483 = vpop.trf.xlu0
  %v484 = vpop.trf.xlu0
  %v485 = vpop.trf.xlu0
  %486 = vxpose.xlu0.b32.start [1/16] %v415, 128
  %487 = vxpose.xlu0.b32.cont [2/16] %v416, 128
  %488 = vxpose.xlu0.b32.cont [3/16] %v417, 128
  %489 = vxpose.xlu0.b32.cont [4/16] %v418, 128
  %490 = vxpose.xlu0.b32.cont [5/16] %v419, 128
  %491 = vxpose.xlu0.b32.cont [6/16] %v420, 128
  %492 = vxpose.xlu0.b32.cont [7/16] %v421, 128
  %493 = vxpose.xlu0.b32.cont [8/16] %v422, 128
  %494 = vxpose.xlu0.b32.cont [9/16] %v423, 128
  %495 = vxpose.xlu0.b32.cont [10/16] %v424, 128
  %496 = vxpose.xlu0.b32.cont [11/16] %v425, 128
  %497 = vxpose.xlu0.b32.cont [12/16] %v426, 128
  %498 = vxpose.xlu0.b32.cont [13/16] %v427, 128
  %499 = vxpose.xlu0.b32.cont [14/16] %v428, 128
  %500 = vxpose.xlu0.b32.cont [15/16] %v429, 128
  %501 = vxpose.xlu0.b32.end [16/16] %v430, 128
  %v502 = vpop.trf.xlu0
  %v503 = vpop.trf.xlu0
  %v504 = vpop.trf.xlu0
  %v505 = vpop.trf.xlu0
  %v506 = vpop.trf.xlu0
  %v507 = vpop.trf.xlu0
  %v508 = vpop.trf.xlu0
  %v509 = vpop.trf.xlu0
  %v510 = vpop.trf.xlu0
  %v511 = vpop.trf.xlu0
  %v512 = vpop.trf.xlu0
  %v513 = vpop.trf.xlu0
  %v514 = vpop.trf.xlu0
  %v515 = vpop.trf.xlu0
  %v516 = vpop.trf.xlu0
  %v517 = vpop.trf.xlu0
  %518 = vxpose.xlu0.b32.start [1/16] %v431, 128
  %519 = vxpose.xlu0.b32.cont [2/16] %v432, 128
  %520 = vxpose.xlu0.b32.cont [3/16] %v433, 128
  %521 = vxpose.xlu0.b32.cont [4/16] %v434, 128
  %522 = vxpose.xlu0.b32.cont [5/16] %v435, 128
  %523 = vxpose.xlu0.b32.cont [6/16] %v436, 128
  %524 = vxpose.xlu0.b32.cont [7/16] %v437, 128
  %525 = vxpose.xlu0.b32.cont [8/16] %v438, 128
  %526 = vxpose.xlu0.b32.cont [9/16] %v439, 128
  %527 = vxpose.xlu0.b32.cont [10/16] %v440, 128
  %528 = vxpose.xlu0.b32.cont [11/16] %v441, 128
  %529 = vxpose.xlu0.b32.cont [12/16] %v442, 128
  %530 = vxpose.xlu0.b32.cont [13/16] %v443, 128
  %531 = vxpose.xlu0.b32.cont [14/16] %v444, 128
  %532 = vxpose.xlu0.b32.cont [15/16] %v445, 128
  %533 = vxpose.xlu0.b32.end [16/16] %v446, 128
  %v534 = vpop.trf.xlu0
  %v535 = vpop.trf.xlu0
  %v536 = vpop.trf.xlu0
  %v537 = vpop.trf.xlu0
  %v538 = vpop.trf.xlu0
  %v539 = vpop.trf.xlu0
  %v540 = vpop.trf.xlu0
  %v541 = vpop.trf.xlu0
  %v542 = vpop.trf.xlu0
  %v543 = vpop.trf.xlu0
  %v544 = vpop.trf.xlu0
  %v545 = vpop.trf.xlu0
  %v546 = vpop.trf.xlu0
  %v547 = vpop.trf.xlu0
  %v548 = vpop.trf.xlu0
  %v549 = vpop.trf.xlu0
  %550 = vxpose.xlu0.b32.start [1/16] %v447, 128
  %551 = vxpose.xlu0.b32.cont [2/16] %v448, 128
  %552 = vxpose.xlu0.b32.cont [3/16] %v449, 128
  %553 = vxpose.xlu0.b32.cont [4/16] %v450, 128
  %554 = vxpose.xlu0.b32.cont [5/16] %v451, 128
  %555 = vxpose.xlu0.b32.cont [6/16] %v452, 128
  %556 = vxpose.xlu0.b32.cont [7/16] %v453, 128
  %557 = vxpose.xlu0.b32.cont [8/16] 0.0, 128
  %558 = vxpose.xlu0.b32.cont [9/16] 0.0, 128
  %559 = vxpose.xlu0.b32.cont [10/16] 0.0, 128
  %560 = vxpose.xlu0.b32.cont [11/16] 0.0, 128
  %561 = vxpose.xlu0.b32.cont [12/16] 0.0, 128
  %562 = vxpose.xlu0.b32.cont [13/16] 0.0, 128
  %563 = vxpose.xlu0.b32.cont [14/16] 0.0, 128
  %564 = vxpose.xlu0.b32.cont [15/16] 0.0, 128
  %565 = vxpose.xlu0.b32.end [16/16] 0.0, 128
  %v566 = vpop.trf.xlu0
  %v567 = vpop.trf.xlu0
  %v568 = vpop.trf.xlu0
  %v569 = vpop.trf.xlu0
  %v570 = vpop.trf.xlu0
  %v571 = vpop.trf.xlu0
  %v572 = vpop.trf.xlu0
  %v573 = vpop.trf.xlu0
  %v574 = vpop.trf.xlu0
  %v575 = vpop.trf.xlu0
  %v576 = vpop.trf.xlu0
  %v577 = vpop.trf.xlu0
  %v578 = vpop.trf.xlu0
  %v579 = vpop.trf.xlu0
  %v580 = vpop.trf.xlu0
  %v581 = vpop.trf.xlu0
  %vm582 = vcmask 457728
  %v584 = vsel %vm582, %v566, 0
  %v587 = vsel %vm582, %v567, 0
  %v590 = vsel %vm582, %v568, 0
  %v593 = vsel %vm582, %v569, 0
  %v596 = vsel %vm582, %v570, 0
  %v599 = vsel %vm582, %v571, 0
  %v602 = vsel %vm582, %v572, 0
  %v605 = vsel %vm582, %v17, 0
  %v608 = vsel %vm582, %v21, 0
  %v611 = vsel %vm582, %v25, 0
  %v614 = vsel %vm582, %v29, 0
  %v617 = vsel %vm582, %v33, 0
  %v620 = vsel %vm582, %v37, 0
  %v623 = vsel %vm582, %v41, 0
  %v626 = vsel %vm582, %v45, 0
  %v629 = vsel %vm582, %v49, 0
  %v632 = vsel %vm582, %v53, 0
  %v635 = vsel %vm582, %v57, 0
  %v638 = vsel %vm582, %v61, 0
  %v641 = vsel %vm582, %v65, 0
  %v644 = vsel %vm582, %v69, 0
  %v647 = vsel %vm582, %v73, 0
  %v650 = vsel %vm582, %v77, 0
  %v653 = vsel %vm582, %v81, 0
  %v656 = vsel %vm582, %v85, 0
  %v659 = vsel %vm582, %v89, 0
  %v662 = vsel %vm582, %v93, 0
  %v665 = vsel %vm582, %v97, 0
  %v668 = vsel %vm582, %v101, 0
  %v671 = vsel %vm582, %v105, 0
  %v674 = vsel %vm582, %v109, 0
  %v677 = vsel %vm582, %v113, 0
  %v680 = vsel %vm582, %v117, 0
  %v683 = vsel %vm582, %v121, 0
  %v686 = vsel %vm582, %v125, 0
  %v689 = vsel %vm582, %v129, 0
  %v692 = vsel %vm582, %v133, 0
  %v695 = vsel %vm582, %v137, 0
  %v698 = vsel %vm582, %v141, 0
  %v701 = vsel %vm582, %v145, 0
  %v704 = vsel %vm582, %v149, 0
  %v707 = vsel %vm582, %v153, 0
  %v710 = vsel %vm582, %v157, 0
  %v713 = vsel %vm582, %v161, 0
  %v716 = vsel %vm582, %v165, 0
  %v719 = vsel %vm582, %v169, 0
  %v722 = vsel %vm582, %v173, 0
  %v725 = vsel %vm582, %v177, 0
  %v728 = vsel %vm582, %v181, 0
  %v731 = vsel %vm582, %v185, 0
  %v734 = vsel %vm582, %v189, 0
  %v737 = vsel %vm582, %v193, 0
  %v740 = vsel %vm582, %v197, 0
  %v743 = vsel %vm582, %v201, 0
  %v746 = vsel %vm582, %v205, 0
  %v749 = vsel %vm582, %v209, 0
  %v752 = vsel %vm582, %v213, 0
  %v755 = vsel %vm582, %v217, 0
  %v758 = vsel %vm582, %v221, 0
  %v761 = vsel %vm582, %v225, 0
  %v764 = vsel %vm582, %v229, 0
  %v767 = vsel %vm582, %v233, 0
  %769 = vmatprep.subr.mxu0 %v15
  %770 = vmatpush1.xpose.msra.mxu0 %v14
  %771 = vmatprep.subr.mxu0 %v19
  %772 = vmatpush1.xpose.msra.mxu0 %v18
  %773 = vmatprep.subr.mxu0 %v23
  %774 = vmatpush1.xpose.msra.mxu0 %v22
  %775 = vmatprep.subr.mxu0 %v27
  %776 = vmatpush1.xpose.msra.mxu0 %v26
  %777 = vmatprep.subr.mxu0 %v31
  %778 = vmatpush1.xpose.msra.mxu0 %v30
  %779 = vmatprep.subr.mxu0 %v35
  %780 = vmatpush1.xpose.msra.mxu0 %v34
  %781 = vmatprep.subr.mxu0 %v39
  %782 = vmatpush1.xpose.msra.mxu0 %v38
  %783 = vmatprep.subr.mxu0 %v43
  %784 = vmatpush1.xpose.msra.mxu0 %v42
  %785 = vmatprep.subr.mxu0 %v47
  %786 = vmatpush1.xpose.msra.mxu0 %v46
  %787 = vmatprep.subr.mxu0 %v51
  %788 = vmatpush1.xpose.msra.mxu0 %v50
  %789 = vmatprep.subr.mxu0 %v55
  %790 = vmatpush1.xpose.msra.mxu0 %v54
  %791 = vmatprep.subr.mxu0 %v59
  %792 = vmatpush1.xpose.msra.mxu0 %v58
  %793 = vmatprep.subr.mxu0 %v63
  %794 = vmatpush1.xpose.msra.mxu0 %v62
  %795 = vmatprep.subr.mxu0 %v67
  %796 = vmatpush1.xpose.msra.mxu0 %v66
  %797 = vmatprep.subr.mxu0 %v71
  %798 = vmatpush1.xpose.msra.mxu0 %v70
  %799 = vmatprep.subr.mxu0 %v75
  %800 = vmatpush1.xpose.msra.mxu0 %v74
  %801 = vmatprep.subr.mxu0 %v79
  %802 = vmatpush1.xpose.msra.mxu0 %v78
  %803 = vmatprep.subr.mxu0 %v83
  %804 = vmatpush1.xpose.msra.mxu0 %v82
  %805 = vmatprep.subr.mxu0 %v87
  %806 = vmatpush1.xpose.msra.mxu0 %v86
  %807 = vmatprep.subr.mxu0 %v91
  %808 = vmatpush1.xpose.msra.mxu0 %v90
  %809 = vmatprep.subr.mxu0 %v95
  %810 = vmatpush1.xpose.msra.mxu0 %v94
  %811 = vmatprep.subr.mxu0 %v99
  %812 = vmatpush1.xpose.msra.mxu0 %v98
  %813 = vmatprep.subr.mxu0 %v103
  %814 = vmatpush1.xpose.msra.mxu0 %v102
  %815 = vmatprep.subr.mxu0 %v107
  %816 = vmatpush1.xpose.msra.mxu0 %v106
  %817 = vmatprep.subr.mxu0 %v111
  %818 = vmatpush1.xpose.msra.mxu0 %v110
  %819 = vmatprep.subr.mxu0 %v115
  %820 = vmatpush1.xpose.msra.mxu0 %v114
  %821 = vmatprep.subr.mxu0 %v119
  %822 = vmatpush1.xpose.msra.mxu0 %v118
  %823 = vmatprep.subr.mxu0 %v123
  %824 = vmatpush1.xpose.msra.mxu0 %v122
  %825 = vmatprep.subr.mxu0 %v127
  %826 = vmatpush1.xpose.msra.mxu0 %v126
  %827 = vmatprep.subr.mxu0 %v131
  %828 = vmatpush1.xpose.msra.mxu0 %v130
  %829 = vmatprep.subr.mxu0 %v135
  %830 = vmatpush1.xpose.msra.mxu0 %v134
  %831 = vmatprep.subr.mxu0 %v139
  %832 = vmatpush1.xpose.msra.mxu0 %v138
  %833 = vmatprep.mubr.f32.mxu0 %v502
  %834 = vmatmul.mubr.f32.gmra.mrb[0].mxu0 %v470
  %v835 = vpop.f32.mrb[0].mxu0
  %v836 = vadd.f32 0.0, %v835
  %v837 = vpop.f32.mrb[0].mxu0
  %v838 = vadd.f32 0.0, %v837
  %839 = vmatprep.mubr.f32.mxu0 %v503
  %840 = vmatmul.mubr.f32.gmra.mrb[0].mxu0 %v471
  %v841 = vpop.f32.mrb[0].mxu0
  %v842 = vadd.f32 0.0, %v841
  %v843 = vpop.f32.mrb[0].mxu0
  %v844 = vadd.f32 0.0, %v843
  %845 = vmatprep.mubr.f32.mxu0 %v504
  %846 = vmatmul.mubr.f32.gmra.mrb[0].mxu0 %v472
  %v847 = vpop.f32.mrb[0].mxu0
  %v848 = vadd.f32 0.0, %v847
  %v849 = vpop.f32.mrb[0].mxu0
  %v850 = vadd.f32 0.0, %v849
  %851 = vmatprep.mubr.f32.mxu0 %v505
  %852 = vmatmul.mubr.f32.gmra.mrb[0].mxu0 %v473
  %v853 = vpop.f32.mrb[0].mxu0
  %v854 = vadd.f32 0.0, %v853
  %v855 = vpop.f32.mrb[0].mxu0
  %v856 = vadd.f32 0.0, %v855
  %857 = vmatprep.mubr.f32.mxu0 %v506
  %858 = vmatmul.mubr.f32.gmra.mrb[0].mxu0 %v474
  %v859 = vpop.f32.mrb[0].mxu0
  %v860 = vadd.f32 0.0, %v859
  %v861 = vpop.f32.mrb[0].mxu0
  %v862 = vadd.f32 0.0, %v861
  %863 = vmatprep.mubr.f32.mxu0 %v507
  %864 = vmatmul.mubr.f32.gmra.mrb[0].mxu0 %v475
  %v865 = vpop.f32.mrb[0].mxu0
  %v866 = vadd.f32 0.0, %v865
  %v867 = vpop.f32.mrb[0].mxu0
  %v868 = vadd.f32 0.0, %v867
  %869 = vmatprep.mubr.f32.mxu0 %v508
  %870 = vmatmul.mubr.f32.gmra.mrb[0].mxu0 %v476
  %v871 = vpop.f32.mrb[0].mxu0
  %v872 = vadd.f32 0.0, %v871
  %v873 = vpop.f32.mrb[0].mxu0
  %v874 = vadd.f32 0.0, %v873
  %875 = vdwg.mxu0
  %876 = vmatprep.subr.mxu0 %v605
  %877 = vmatpush1.xpose.msra.mxu0 %v16
  %878 = vmatprep.subr.mxu0 %v608
  %879 = vmatpush1.xpose.msra.mxu0 %v20
  %880 = vmatprep.subr.mxu0 %v611
  %881 = vmatpush1.xpose.msra.mxu0 %v24
  %882 = vmatprep.subr.mxu0 %v614
  %883 = vmatpush1.xpose.msra.mxu0 %v28
  %884 = vmatprep.subr.mxu0 %v617
  %885 = vmatpush1.xpose.msra.mxu0 %v32
  %886 = vmatprep.subr.mxu0 %v620
  %887 = vmatpush1.xpose.msra.mxu0 %v36
  %888 = vmatprep.subr.mxu0 %v623
  %889 = vmatpush1.xpose.msra.mxu0 %v40
  %890 = vmatprep.subr.mxu0 %v626
  %891 = vmatpush1.xpose.msra.mxu0 %v44
  %892 = vmatprep.subr.mxu0 %v629
  %893 = vmatpush1.xpose.msra.mxu0 %v48
  %894 = vmatprep.subr.mxu0 %v632
  %895 = vmatpush1.xpose.msra.mxu0 %v52
  %896 = vmatprep.subr.mxu0 %v635
  %897 = vmatpush1.xpose.msra.mxu0 %v56
  %898 = vmatprep.subr.mxu0 %v638
  %899 = vmatpush1.xpose.msra.mxu0 %v60
  %900 = vmatprep.subr.mxu0 %v641
  %901 = vmatpush1.xpose.msra.mxu0 %v64
  %902 = vmatprep.subr.mxu0 %v644
  %903 = vmatpush1.xpose.msra.mxu0 %v68
  %904 = vmatprep.subr.mxu0 %v647
  %905 = vmatpush1.xpose.msra.mxu0 %v72
  %906 = vmatprep.subr.mxu0 %v650
  %907 = vmatpush1.xpose.msra.mxu0 %v76
  %908 = vmatprep.subr.mxu0 %v653
  %909 = vmatpush1.xpose.msra.mxu0 %v80
  %910 = vmatprep.subr.mxu0 %v656
  %911 = vmatpush1.xpose.msra.mxu0 %v84
  %912 = vmatprep.subr.mxu0 %v659
  %913 = vmatpush1.xpose.msra.mxu0 %v88
  %914 = vmatprep.subr.mxu0 %v662
  %915 = vmatpush1.xpose.msra.mxu0 %v92
  %916 = vmatprep.subr.mxu0 %v665
  %917 = vmatpush1.xpose.msra.mxu0 %v96
  %918 = vmatprep.subr.mxu0 %v668
  %919 = vmatpush1.xpose.msra.mxu0 %v100
  %920 = vmatprep.subr.mxu0 %v671
  %921 = vmatpush1.xpose.msra.mxu0 %v104
  %922 = vmatprep.subr.mxu0 %v674
  %923 = vmatpush1.xpose.msra.mxu0 %v108
  %924 = vmatprep.subr.mxu0 %v677
  %925 = vmatpush1.xpose.msra.mxu0 %v112
  %926 = vmatprep.subr.mxu0 %v680
  %927 = vmatpush1.xpose.msra.mxu0 %v116
  %928 = vmatprep.subr.mxu0 %v683
  %929 = vmatpush1.xpose.msra.mxu0 %v120
  %930 = vmatprep.subr.mxu0 %v686
  %931 = vmatpush1.xpose.msra.mxu0 %v124
  %932 = vmatprep.subr.mxu0 %v689
  %933 = vmatpush1.xpose.msra.mxu0 %v128
  %934 = vmatprep.subr.mxu0 %v692
  %935 = vmatpush1.xpose.msra.mxu0 %v132
  %936 = vmatprep.subr.mxu0 %v695
  %937 = vmatpush1.xpose.msra.mxu0 %v136
  %938 = vmatprep.subr.mxu0 %v698
  %939 = vmatpush1.xpose.msra.mxu0 %v140
  %940 = vmatprep.mubr.f32.mxu0 %v584
  %941 = vmatmul.mubr.f32.gmra.mrb[0].mxu0 %v534
  %v942 = vpop.f32.mrb[0].mxu0
  %v943 = vadd.f32 %v836, %v942
  %v944 = vpop.f32.mrb[0].mxu0
  %v945 = vadd.f32 %v838, %v944
  %946 = vmatprep.mubr.f32.mxu0 %v587
  %947 = vmatmul.mubr.f32.gmra.mrb[0].mxu0 %v535
  %v948 = vpop.f32.mrb[0].mxu0
  %v949 = vadd.f32 %v842, %v948
  %v950 = vpop.f32.mrb[0].mxu0
  %v951 = vadd.f32 %v844, %v950
  %952 = vmatprep.mubr.f32.mxu0 %v590
  %953 = vmatmul.mubr.f32.gmra.mrb[0].mxu0 %v536
  %v954 = vpop.f32.mrb[0].mxu0
  %v955 = vadd.f32 %v848, %v954
  %v956 = vpop.f32.mrb[0].mxu0
  %v957 = vadd.f32 %v850, %v956
  %958 = vmatprep.mubr.f32.mxu0 %v593
  %959 = vmatmul.mubr.f32.gmra.mrb[0].mxu0 %v537
  %v960 = vpop.f32.mrb[0].mxu0
  %v961 = vadd.f32 %v854, %v960
  %v962 = vpop.f32.mrb[0].mxu0
  %v963 = vadd.f32 %v856, %v962
  %964 = vmatprep.mubr.f32.mxu0 %v596
  %965 = vmatmul.mubr.f32.gmra.mrb[0].mxu0 %v538
  %v966 = vpop.f32.mrb[0].mxu0
  %v967 = vadd.f32 %v860, %v966
  %v968 = vpop.f32.mrb[0].mxu0
  %v969 = vadd.f32 %v862, %v968
  %970 = vmatprep.mubr.f32.mxu0 %v599
  %971 = vmatmul.mubr.f32.gmra.mrb[0].mxu0 %v539
  %v972 = vpop.f32.mrb[0].mxu0
  %v973 = vadd.f32 %v866, %v972
  %v974 = vpop.f32.mrb[0].mxu0
  %v975 = vadd.f32 %v868, %v974
  %976 = vmatprep.mubr.f32.mxu0 %v602
  %977 = vmatmul.mubr.f32.gmra.mrb[0].mxu0 %v540
  %v978 = vpop.f32.mrb[0].mxu0
  %v979 = vadd.f32 %v872, %v978
  %v980 = vpop.f32.mrb[0].mxu0
  %v981 = vadd.f32 %v874, %v980
  %982 = vdwg.mxu0
  %983 = vmatprep.subr.mxu0 %v143
  %984 = vmatpush1.xpose.msra.mxu0 %v142
  %985 = vmatprep.subr.mxu0 %v147
  %986 = vmatpush1.xpose.msra.mxu0 %v146
  %987 = vmatprep.subr.mxu0 %v151
  %988 = vmatpush1.xpose.msra.mxu0 %v150
  %989 = vmatprep.subr.mxu0 %v155
  %990 = vmatpush1.xpose.msra.mxu0 %v154
  %991 = vmatprep.subr.mxu0 %v159
  %992 = vmatpush1.xpose.msra.mxu0 %v158
  %993 = vmatprep.subr.mxu0 %v163
  %994 = vmatpush1.xpose.msra.mxu0 %v162
  %995 = vmatprep.subr.mxu0 %v167
  %996 = vmatpush1.xpose.msra.mxu0 %v166
  %997 = vmatprep.subr.mxu0 %v171
  %998 = vmatpush1.xpose.msra.mxu0 %v170
  %999 = vmatprep.subr.mxu0 %v175
  %1000 = vmatpush1.xpose.msra.mxu0 %v174
  %1001 = vmatprep.subr.mxu0 %v179
  %1002 = vmatpush1.xpose.msra.mxu0 %v178
  %1003 = vmatprep.subr.mxu0 %v183
  %1004 = vmatpush1.xpose.msra.mxu0 %v182
  %1005 = vmatprep.subr.mxu0 %v187
  %1006 = vmatpush1.xpose.msra.mxu0 %v186
  %1007 = vmatprep.subr.mxu0 %v191
  %1008 = vmatpush1.xpose.msra.mxu0 %v190
  %1009 = vmatprep.subr.mxu0 %v195
  %1010 = vmatpush1.xpose.msra.mxu0 %v194
  %1011 = vmatprep.subr.mxu0 %v199
  %1012 = vmatpush1.xpose.msra.mxu0 %v198
  %1013 = vmatprep.subr.mxu0 %v203
  %1014 = vmatpush1.xpose.msra.mxu0 %v202
  %1015 = vmatprep.subr.mxu0 %v207
  %1016 = vmatpush1.xpose.msra.mxu0 %v206
  %1017 = vmatprep.subr.mxu0 %v211
  %1018 = vmatpush1.xpose.msra.mxu0 %v210
  %1019 = vmatprep.subr.mxu0 %v215
  %1020 = vmatpush1.xpose.msra.mxu0 %v214
  %1021 = vmatprep.subr.mxu0 %v219
  %1022 = vmatpush1.xpose.msra.mxu0 %v218
  %1023 = vmatprep.subr.mxu0 %v223
  %1024 = vmatpush1.xpose.msra.mxu0 %v222
  %1025 = vmatprep.subr.mxu0 %v227
  %1026 = vmatpush1.xpose.msra.mxu0 %v226
  %1027 = vmatprep.subr.mxu0 %v231
  %1028 = vmatpush1.xpose.msra.mxu0 %v230
  %1029 = vmatprep.subr.mxu0 0.0
  %1030 = vmatpush1.xpose.msra.mxu0 0.0
  %1031 = vmatprep.subr.mxu0 0.0
  %1032 = vmatpush1.xpose.msra.mxu0 0.0
  %1033 = vmatprep.subr.mxu0 0.0
  %1034 = vmatpush1.xpose.msra.mxu0 0.0
  %1035 = vmatprep.subr.mxu0 0.0
  %1036 = vmatpush1.xpose.msra.mxu0 0.0
  %1037 = vmatprep.subr.mxu0 0.0
  %1038 = vmatpush1.xpose.msra.mxu0 0.0
  %1039 = vmatprep.subr.mxu0 0.0
  %1040 = vmatpush1.xpose.msra.mxu0 0.0
  %1041 = vmatprep.subr.mxu0 0.0
  %1042 = vmatpush1.xpose.msra.mxu0 0.0
  %1043 = vmatprep.subr.mxu0 0.0
  %1044 = vmatpush1.xpose.msra.mxu0 0.0
  %1045 = vmatprep.subr.mxu0 0.0
  %1046 = vmatpush1.xpose.msra.mxu0 0.0
  %1047 = vmatprep.mubr.f32.mxu0 %v502
  %1048 = vmatmul.mubr.f32.gmra.mrb[0].mxu0 %v470
  %v1049 = vpop.f32.mrb[0].mxu0
  %v1050 = vadd.f32 0.0, %v1049
  %v1051 = vpop.f32.mrb[0].mxu0
  %v1052 = vadd.f32 0.0, %v1051
  %1053 = vmatprep.mubr.f32.mxu0 %v503
  %1054 = vmatmul.mubr.f32.gmra.mrb[0].mxu0 %v471
  %v1055 = vpop.f32.mrb[0].mxu0
  %v1056 = vadd.f32 0.0, %v1055
  %v1057 = vpop.f32.mrb[0].mxu0
  %v1058 = vadd.f32 0.0, %v1057
  %1059 = vmatprep.mubr.f32.mxu0 %v504
  %1060 = vmatmul.mubr.f32.gmra.mrb[0].mxu0 %v472
  %v1061 = vpop.f32.mrb[0].mxu0
  %v1062 = vadd.f32 0.0, %v1061
  %v1063 = vpop.f32.mrb[0].mxu0
  %v1064 = vadd.f32 0.0, %v1063
  %1065 = vmatprep.mubr.f32.mxu0 %v505
  %1066 = vmatmul.mubr.f32.gmra.mrb[0].mxu0 %v473
  %v1067 = vpop.f32.mrb[0].mxu0
  %v1068 = vadd.f32 0.0, %v1067
  %v1069 = vpop.f32.mrb[0].mxu0
  %v1070 = vadd.f32 0.0, %v1069
  %1071 = vmatprep.mubr.f32.mxu0 %v506
  %1072 = vmatmul.mubr.f32.gmra.mrb[0].mxu0 %v474
  %v1073 = vpop.f32.mrb[0].mxu0
  %v1074 = vadd.f32 0.0, %v1073
  %v1075 = vpop.f32.mrb[0].mxu0
  %v1076 = vadd.f32 0.0, %v1075
  %1077 = vmatprep.mubr.f32.mxu0 %v507
  %1078 = vmatmul.mubr.f32.gmra.mrb[0].mxu0 %v475
  %v1079 = vpop.f32.mrb[0].mxu0
  %v1080 = vadd.f32 0.0, %v1079
  %v1081 = vpop.f32.mrb[0].mxu0
  %v1082 = vadd.f32 0.0, %v1081
  %1083 = vmatprep.mubr.f32.mxu0 %v508
  %1084 = vmatmul.mubr.f32.gmra.mrb[0].mxu0 %v476
  %v1085 = vpop.f32.mrb[0].mxu0
  %v1086 = vadd.f32 0.0, %v1085
  %v1087 = vpop.f32.mrb[0].mxu0
  %v1088 = vadd.f32 0.0, %v1087
  %1089 = vdwg.mxu0
  %1090 = vmatprep.subr.mxu0 %v701
  %1091 = vmatpush1.xpose.msra.mxu0 %v144
  %1092 = vmatprep.subr.mxu0 %v704
  %1093 = vmatpush1.xpose.msra.mxu0 %v148
  %1094 = vmatprep.subr.mxu0 %v707
  %1095 = vmatpush1.xpose.msra.mxu0 %v152
  %1096 = vmatprep.subr.mxu0 %v710
  %1097 = vmatpush1.xpose.msra.mxu0 %v156
  %1098 = vmatprep.subr.mxu0 %v713
  %1099 = vmatpush1.xpose.msra.mxu0 %v160
  %1100 = vmatprep.subr.mxu0 %v716
  %1101 = vmatpush1.xpose.msra.mxu0 %v164
  %1102 = vmatprep.subr.mxu0 %v719
  %1103 = vmatpush1.xpose.msra.mxu0 %v168
  %1104 = vmatprep.subr.mxu0 %v722
  %1105 = vmatpush1.xpose.msra.mxu0 %v172
  %1106 = vmatprep.subr.mxu0 %v725
  %1107 = vmatpush1.xpose.msra.mxu0 %v176
  %1108 = vmatprep.subr.mxu0 %v728
  %1109 = vmatpush1.xpose.msra.mxu0 %v180
  %1110 = vmatprep.subr.mxu0 %v731
  %1111 = vmatpush1.xpose.msra.mxu0 %v184
  %1112 = vmatprep.subr.mxu0 %v734
  %1113 = vmatpush1.xpose.msra.mxu0 %v188
  %1114 = vmatprep.subr.mxu0 %v737
  %1115 = vmatpush1.xpose.msra.mxu0 %v192
  %1116 = vmatprep.subr.mxu0 %v740
  %1117 = vmatpush1.xpose.msra.mxu0 %v196
  %1118 = vmatprep.subr.mxu0 %v743
  %1119 = vmatpush1.xpose.msra.mxu0 %v200
  %1120 = vmatprep.subr.mxu0 %v746
  %1121 = vmatpush1.xpose.msra.mxu0 %v204
  %1122 = vmatprep.subr.mxu0 %v749
  %1123 = vmatpush1.xpose.msra.mxu0 %v208
  %1124 = vmatprep.subr.mxu0 %v752
  %1125 = vmatpush1.xpose.msra.mxu0 %v212
  %1126 = vmatprep.subr.mxu0 %v755
  %1127 = vmatpush1.xpose.msra.mxu0 %v216
  %1128 = vmatprep.subr.mxu0 %v758
  %1129 = vmatpush1.xpose.msra.mxu0 %v220
  %1130 = vmatprep.subr.mxu0 %v761
  %1131 = vmatpush1.xpose.msra.mxu0 %v224
  %1132 = vmatprep.subr.mxu0 %v764
  %1133 = vmatpush1.xpose.msra.mxu0 %v228
  %1134 = vmatprep.subr.mxu0 %v767
  %1135 = vmatpush1.xpose.msra.mxu0 %v232
  %1136 = vmatprep.subr.mxu0 0.0
  %1137 = vmatpush1.xpose.msra.mxu0 0.0
  %1138 = vmatprep.subr.mxu0 0.0
  %1139 = vmatpush1.xpose.msra.mxu0 0.0
  %1140 = vmatprep.subr.mxu0 0.0
  %1141 = vmatpush1.xpose.msra.mxu0 0.0
  %1142 = vmatprep.subr.mxu0 0.0
  %1143 = vmatpush1.xpose.msra.mxu0 0.0
  %1144 = vmatprep.subr.mxu0 0.0
  %1145 = vmatpush1.xpose.msra.mxu0 0.0
  %1146 = vmatprep.subr.mxu0 0.0
  %1147 = vmatpush1.xpose.msra.mxu0 0.0
  %1148 = vmatprep.subr.mxu0 0.0
  %1149 = vmatpush1.xpose.msra.mxu0 0.0
  %1150 = vmatprep.subr.mxu0 0.0
  %1151 = vmatpush1.xpose.msra.mxu0 0.0
  %1152 = vmatprep.subr.mxu0 0.0
  %1153 = vmatpush1.xpose.msra.mxu0 0.0
  %1154 = vmatprep.mubr.f32.mxu0 %v584
  %1155 = vmatmul.mubr.f32.gmra.mrb[0].mxu0 %v534
  %v1156 = vpop.f32.mrb[0].mxu0
  %v1157 = vadd.f32 %v1050, %v1156
  %v1158 = vpop.f32.mrb[0].mxu0
  %v1159 = vadd.f32 %v1052, %v1158
  %1160 = vmatprep.mubr.f32.mxu0 %v587
  %1161 = vmatmul.mubr.f32.gmra.mrb[0].mxu0 %v535
  %v1162 = vpop.f32.mrb[0].mxu0
  %v1163 = vadd.f32 %v1056, %v1162
  %v1164 = vpop.f32.mrb[0].mxu0
  %v1165 = vadd.f32 %v1058, %v1164
  %1166 = vmatprep.mubr.f32.mxu0 %v590
  %1167 = vmatmul.mubr.f32.gmra.mrb[0].mxu0 %v536
  %v1168 = vpop.f32.mrb[0].mxu0
  %v1169 = vadd.f32 %v1062, %v1168
  %v1170 = vpop.f32.mrb[0].mxu0
  %v1171 = vadd.f32 %v1064, %v1170
  %1172 = vmatprep.mubr.f32.mxu0 %v593
  %1173 = vmatmul.mubr.f32.gmra.mrb[0].mxu0 %v537
  %v1174 = vpop.f32.mrb[0].mxu0
  %v1175 = vadd.f32 %v1068, %v1174
  %v1176 = vpop.f32.mrb[0].mxu0
  %v1177 = vadd.f32 %v1070, %v1176
  %1178 = vmatprep.mubr.f32.mxu0 %v596
  %1179 = vmatmul.mubr.f32.gmra.mrb[0].mxu0 %v538
  %v1180 = vpop.f32.mrb[0].mxu0
  %v1181 = vadd.f32 %v1074, %v1180
  %v1182 = vpop.f32.mrb[0].mxu0
  %v1183 = vadd.f32 %v1076, %v1182
  %1184 = vmatprep.mubr.f32.mxu0 %v599
  %1185 = vmatmul.mubr.f32.gmra.mrb[0].mxu0 %v539
  %v1186 = vpop.f32.mrb[0].mxu0
  %v1187 = vadd.f32 %v1080, %v1186
  %v1188 = vpop.f32.mrb[0].mxu0
  %v1189 = vadd.f32 %v1082, %v1188
  %1190 = vmatprep.mubr.f32.mxu0 %v602
  %1191 = vmatmul.mubr.f32.gmra.mrb[0].mxu0 %v540
  %v1192 = vpop.f32.mrb[0].mxu0
  %v1193 = vadd.f32 %v1086, %v1192
  %v1194 = vpop.f32.mrb[0].mxu0
  %v1195 = vadd.f32 %v1088, %v1194
  %1196 = vdwg.mxu0
  %1197 = vst [vmem:[%s3] sm:$0xff] %v943
  %1198 = vst [vmem:[%s3 + $0x8] sm:$0xff] %v945
  %1199 = vst [vmem:[%s3 + $0x10] sm:$0xff] %v1157
  %1200 = vst.msk [vmem:[%s3 + $0x18] sm:$0xff] %vm582, %v1159
  %1201 = vst [vmem:[%s3 + $0x20] sm:$0xff] %v949
  %1202 = vst [vmem:[%s3 + $0x28] sm:$0xff] %v951
  %1203 = vst [vmem:[%s3 + $0x30] sm:$0xff] %v1163
  %1204 = vst.msk [vmem:[%s3 + $0x38] sm:$0xff] %vm582, %v1165
  %1205 = vst [vmem:[%s3 + $0x40] sm:$0xff] %v955
  %1206 = vst [vmem:[%s3 + $0x48] sm:$0xff] %v957
  %1207 = vst [vmem:[%s3 + $0x50] sm:$0xff] %v1169
  %1208 = vst.msk [vmem:[%s3 + $0x58] sm:$0xff] %vm582, %v1171
  %1209 = vst [vmem:[%s3 + $0x60] sm:$0xff] %v961
  %1210 = vst [vmem:[%s3 + $0x68] sm:$0xff] %v963
  %1211 = vst [vmem:[%s3 + $0x70] sm:$0xff] %v1175
  %1212 = vst.msk [vmem:[%s3 + $0x78] sm:$0xff] %vm582, %v1177
  %1213 = vst [vmem:[%s3 + $0x80] sm:$0xff] %v967
  %1214 = vst [vmem:[%s3 + $0x88] sm:$0xff] %v969
  %1215 = vst [vmem:[%s3 + $0x90] sm:$0xff] %v1181
  %1216 = vst.msk [vmem:[%s3 + $0x98] sm:$0xff] %vm582, %v1183
  %1217 = vst [vmem:[%s3 + $0xa0] sm:$0xff] %v973
  %1218 = vst [vmem:[%s3 + $0xa8] sm:$0xff] %v975
  %1219 = vst [vmem:[%s3 + $0xb0] sm:$0xff] %v1187
  %1220 = vst.msk [vmem:[%s3 + $0xb8] sm:$0xff] %vm582, %v1189
  %1221 = vst [vmem:[%s3 + $0xc0] sm:$0x1] %v979
  %1222 = vst [vmem:[%s3 + $0xc8] sm:$0x1] %v981
  %1223 = vst [vmem:[%s3 + $0xd0] sm:$0x1] %v1193
  %vm1224 = vcmask 450560
  %1225 = vst.msk [vmem:[%s3 + $0xd8] sm:$0x1] %vm1224, %v1195
  %s1226 = scalar_lea.vmem %s0, 440
  %v1227 = vld [vmem:[%s1226] sm:$0xff]
  %v1228 = vld [vmem:[%s1226 + $0x8] sm:$0xff]
  %v1229 = vld [vmem:[%s1226 + $0x10] sm:$0xff]
  %v1230 = vld [vmem:[%s1226 + $0x18] sm:$0xff]
  %v1231 = vld [vmem:[%s1226 + $0x20] sm:$0xff]
  %v1232 = vld [vmem:[%s1226 + $0x28] sm:$0xff]
  %v1233 = vld [vmem:[%s1226 + $0x30] sm:$0xff]
  %v1234 = vld [vmem:[%s1226 + $0x38] sm:$0xff]
  %v1235 = vld [vmem:[%s1226 + $0x40] sm:$0xff]
  %v1236 = vld [vmem:[%s1226 + $0x48] sm:$0xff]
  %v1237 = vld [vmem:[%s1226 + $0x50] sm:$0xff]
  %v1238 = vld [vmem:[%s1226 + $0x58] sm:$0xff]
  %v1239 = vld [vmem:[%s1226 + $0x60] sm:$0xff]
  %v1240 = vld [vmem:[%s1226 + $0x68] sm:$0xff]
  %v1241 = vld [vmem:[%s1226 + $0x70] sm:$0xff]
  %v1242 = vld [vmem:[%s1226 + $0x78] sm:$0xff]
  %v1243 = vld [vmem:[%s1226 + $0x80] sm:$0xff]
  %v1244 = vld [vmem:[%s1226 + $0x88] sm:$0xff]
  %v1245 = vld [vmem:[%s1226 + $0x90] sm:$0xff]
  %v1246 = vld [vmem:[%s1226 + $0x98] sm:$0xff]
  %v1247 = vld [vmem:[%s1226 + $0xa0] sm:$0xff]
  %v1248 = vld [vmem:[%s1226 + $0xa8] sm:$0xff]
  %v1249 = vld [vmem:[%s1226 + $0xb0] sm:$0xff]
  %v1250 = vld [vmem:[%s1226 + $0xb8] sm:$0xff]
  %v1251 = vld [vmem:[%s1226 + $0xc0] sm:$0xff]
  %v1252 = vld [vmem:[%s1226 + $0xc8] sm:$0xff]
  %v1253 = vld [vmem:[%s1226 + $0xd0] sm:$0xff]
  %v1254 = vld [vmem:[%s1226 + $0xd8] sm:$0xff]
  %v1255 = vld [vmem:[%s1226 + $0xe0] sm:$0xff]
  %v1256 = vld [vmem:[%s1226 + $0xe8] sm:$0xff]
  %v1257 = vld [vmem:[%s1226 + $0xf0] sm:$0xff]
  %v1258 = vld [vmem:[%s1226 + $0xf8] sm:$0xff]
  %v1259 = vld [vmem:[%s1226 + $0x100] sm:$0xff]
  %v1260 = vld [vmem:[%s1226 + $0x108] sm:$0xff]
  %v1261 = vld [vmem:[%s1226 + $0x110] sm:$0xff]
  %v1262 = vld [vmem:[%s1226 + $0x118] sm:$0xff]
  %v1263 = vld [vmem:[%s1226 + $0x120] sm:$0xff]
  %v1264 = vld [vmem:[%s1226 + $0x128] sm:$0xff]
  %v1265 = vld [vmem:[%s1226 + $0x130] sm:$0xff]
  %v1266 = vld [vmem:[%s1226 + $0x138] sm:$0xff]
  %v1267 = vld [vmem:[%s1226 + $0x140] sm:$0xff]
  %v1268 = vld [vmem:[%s1226 + $0x148] sm:$0xff]
  %v1269 = vld [vmem:[%s1226 + $0x150] sm:$0xff]
  %v1270 = vld [vmem:[%s1226 + $0x158] sm:$0xff]
  %v1271 = vld [vmem:[%s1226 + $0x160] sm:$0xff]
  %v1272 = vld [vmem:[%s1226 + $0x168] sm:$0xff]
  %v1273 = vld [vmem:[%s1226 + $0x170] sm:$0xff]
  %v1274 = vld [vmem:[%s1226 + $0x178] sm:$0xff]
  %v1275 = vld [vmem:[%s1226 + $0x180] sm:$0xff]
  %v1276 = vld [vmem:[%s1226 + $0x188] sm:$0xff]
  %v1277 = vld [vmem:[%s1226 + $0x190] sm:$0xff]
  %v1278 = vld [vmem:[%s1226 + $0x198] sm:$0xff]
  %v1279 = vld [vmem:[%s1226 + $0x1a0] sm:$0xff]
  %v1280 = vld [vmem:[%s1226 + $0x1a8] sm:$0xff]
  %v1281 = vld [vmem:[%s1226 + $0x1b0] sm:$0xff]
  %s1282 = scalar_lea.vmem %s1, 440
  %v1283 = vld [vmem:[%s1282] sm:$0xff]
  %v1284 = vld [vmem:[%s1282 + $0x8] sm:$0xff]
  %v1285 = vld [vmem:[%s1282 + $0x10] sm:$0xff]
  %v1286 = vld [vmem:[%s1282 + $0x18] sm:$0xff]
  %v1287 = vld [vmem:[%s1282 + $0x20] sm:$0xff]
  %v1288 = vld [vmem:[%s1282 + $0x28] sm:$0xff]
  %v1289 = vld [vmem:[%s1282 + $0x30] sm:$0xff]
  %v1290 = vld [vmem:[%s1282 + $0x38] sm:$0xff]
  %v1291 = vld [vmem:[%s1282 + $0x40] sm:$0xff]
  %v1292 = vld [vmem:[%s1282 + $0x48] sm:$0xff]
  %v1293 = vld [vmem:[%s1282 + $0x50] sm:$0xff]
  %v1294 = vld [vmem:[%s1282 + $0x58] sm:$0xff]
  %v1295 = vld [vmem:[%s1282 + $0x60] sm:$0xff]
  %v1296 = vld [vmem:[%s1282 + $0x68] sm:$0xff]
  %v1297 = vld [vmem:[%s1282 + $0x70] sm:$0xff]
  %v1298 = vld [vmem:[%s1282 + $0x78] sm:$0xff]
  %v1299 = vld [vmem:[%s1282 + $0x80] sm:$0xff]
  %v1300 = vld [vmem:[%s1282 + $0x88] sm:$0xff]
  %v1301 = vld [vmem:[%s1282 + $0x90] sm:$0xff]
  %v1302 = vld [vmem:[%s1282 + $0x98] sm:$0xff]
  %v1303 = vld [vmem:[%s1282 + $0xa0] sm:$0xff]
  %v1304 = vld [vmem:[%s1282 + $0xa8] sm:$0xff]
  %v1305 = vld [vmem:[%s1282 + $0xb0] sm:$0xff]
  %v1306 = vld [vmem:[%s1282 + $0xb8] sm:$0xff]
  %v1307 = vld [vmem:[%s1282 + $0xc0] sm:$0xff]
  %v1308 = vld [vmem:[%s1282 + $0xc8] sm:$0xff]
  %v1309 = vld [vmem:[%s1282 + $0xd0] sm:$0xff]
  %v1310 = vld [vmem:[%s1282 + $0xd8] sm:$0xff]
  %v1311 = vld [vmem:[%s1282 + $0xe0] sm:$0xff]
  %v1312 = vld [vmem:[%s1282 + $0xe8] sm:$0xff]
  %v1313 = vld [vmem:[%s1282 + $0xf0] sm:$0xff]
  %v1314 = vld [vmem:[%s1282 + $0xf8] sm:$0xff]
  %v1315 = vld [vmem:[%s1282 + $0x100] sm:$0xff]
  %v1316 = vld [vmem:[%s1282 + $0x108] sm:$0xff]
  %v1317 = vld [vmem:[%s1282 + $0x110] sm:$0xff]
  %v1318 = vld [vmem:[%s1282 + $0x118] sm:$0xff]
  %v1319 = vld [vmem:[%s1282 + $0x120] sm:$0xff]
  %v1320 = vld [vmem:[%s1282 + $0x128] sm:$0xff]
  %v1321 = vld [vmem:[%s1282 + $0x130] sm:$0xff]
  %v1322 = vld [vmem:[%s1282 + $0x138] sm:$0xff]
  %v1323 = vld [vmem:[%s1282 + $0x140] sm:$0xff]
  %v1324 = vld [vmem:[%s1282 + $0x148] sm:$0xff]
  %v1325 = vld [vmem:[%s1282 + $0x150] sm:$0xff]
  %v1326 = vld [vmem:[%s1282 + $0x158] sm:$0xff]
  %v1327 = vld [vmem:[%s1282 + $0x160] sm:$0xff]
  %v1328 = vld [vmem:[%s1282 + $0x168] sm:$0xff]
  %v1329 = vld [vmem:[%s1282 + $0x170] sm:$0xff]
  %v1330 = vld [vmem:[%s1282 + $0x178] sm:$0xff]
  %v1331 = vld [vmem:[%s1282 + $0x180] sm:$0xff]
  %v1332 = vld [vmem:[%s1282 + $0x188] sm:$0xff]
  %v1333 = vld [vmem:[%s1282 + $0x190] sm:$0xff]
  %v1334 = vld [vmem:[%s1282 + $0x198] sm:$0xff]
  %v1335 = vld [vmem:[%s1282 + $0x1a0] sm:$0xff]
  %v1336 = vld [vmem:[%s1282 + $0x1a8] sm:$0xff]
  %v1337 = vld [vmem:[%s1282 + $0x1b0] sm:$0xff]
  %v1338 = vadd.f32 %v1227, %v1283
  %v1339 = vadd.f32 %v1228, %v1284
  %v1340 = vadd.f32 %v1229, %v1285
  %v1341 = vadd.f32 %v1230, %v1286
  %v1342 = vadd.f32 %v1231, %v1287
  %v1343 = vadd.f32 %v1232, %v1288
  %v1344 = vadd.f32 %v1233, %v1289
  %v1345 = vadd.f32 %v1234, %v1290
  %v1346 = vadd.f32 %v1235, %v1291
  %v1347 = vadd.f32 %v1236, %v1292
  %v1348 = vadd.f32 %v1237, %v1293
  %v1349 = vadd.f32 %v1238, %v1294
  %v1350 = vadd.f32 %v1239, %v1295
  %v1351 = vadd.f32 %v1240, %v1296
  %v1352 = vadd.f32 %v1241, %v1297
  %v1353 = vadd.f32 %v1242, %v1298
  %v1354 = vadd.f32 %v1243, %v1299
  %v1355 = vadd.f32 %v1244, %v1300
  %v1356 = vadd.f32 %v1245, %v1301
  %v1357 = vadd.f32 %v1246, %v1302
  %v1358 = vadd.f32 %v1247, %v1303
  %v1359 = vadd.f32 %v1248, %v1304
  %v1360 = vadd.f32 %v1249, %v1305
  %v1361 = vadd.f32 %v1250, %v1306
  %v1362 = vadd.f32 %v1251, %v1307
  %v1363 = vadd.f32 %v1252, %v1308
  %v1364 = vadd.f32 %v1253, %v1309
  %v1365 = vadd.f32 %v1254, %v1310
  %v1366 = vadd.f32 %v1255, %v1311
  %v1367 = vadd.f32 %v1256, %v1312
  %v1368 = vadd.f32 %v1257, %v1313
  %v1369 = vadd.f32 %v1258, %v1314
  %v1370 = vadd.f32 %v1259, %v1315
  %v1371 = vadd.f32 %v1260, %v1316
  %v1372 = vadd.f32 %v1261, %v1317
  %v1373 = vadd.f32 %v1262, %v1318
  %v1374 = vadd.f32 %v1263, %v1319
  %v1375 = vadd.f32 %v1264, %v1320
  %v1376 = vadd.f32 %v1265, %v1321
  %v1377 = vadd.f32 %v1266, %v1322
  %v1378 = vadd.f32 %v1267, %v1323
  %v1379 = vadd.f32 %v1268, %v1324
  %v1380 = vadd.f32 %v1269, %v1325
  %v1381 = vadd.f32 %v1270, %v1326
  %v1382 = vadd.f32 %v1271, %v1327
  %v1383 = vadd.f32 %v1272, %v1328
  %v1384 = vadd.f32 %v1273, %v1329
  %v1385 = vadd.f32 %v1274, %v1330
  %v1386 = vadd.f32 %v1275, %v1331
  %v1387 = vadd.f32 %v1276, %v1332
  %v1388 = vadd.f32 %v1277, %v1333
  %v1389 = vadd.f32 %v1278, %v1334
  %v1390 = vadd.f32 %v1279, %v1335
  %v1391 = vadd.f32 %v1280, %v1336
  %v1392 = vadd.f32 %v1281, %v1337
  %v1393 = vmax.f32 %v1338, 0.0
  %v1394 = vmax.f32 %v1339, 0.0
  %v1395 = vmax.f32 %v1340, 0.0
  %v1396 = vmax.f32 %v1341, 0.0
  %v1397 = vmax.f32 %v1342, 0.0
  %v1398 = vmax.f32 %v1343, 0.0
  %v1399 = vmax.f32 %v1344, 0.0
  %v1400 = vmax.f32 %v1345, 0.0
  %v1401 = vmax.f32 %v1346, 0.0
  %v1402 = vmax.f32 %v1347, 0.0
  %v1403 = vmax.f32 %v1348, 0.0
  %v1404 = vmax.f32 %v1349, 0.0
  %v1405 = vmax.f32 %v1350, 0.0
  %v1406 = vmax.f32 %v1351, 0.0
  %v1407 = vmax.f32 %v1352, 0.0
  %v1408 = vmax.f32 %v1353, 0.0
  %v1409 = vmax.f32 %v1354, 0.0
  %v1410 = vmax.f32 %v1355, 0.0
  %v1411 = vmax.f32 %v1356, 0.0
  %v1412 = vmax.f32 %v1357, 0.0
  %v1413 = vmax.f32 %v1358, 0.0
  %v1414 = vmax.f32 %v1359, 0.0
  %v1415 = vmax.f32 %v1360, 0.0
  %v1416 = vmax.f32 %v1361, 0.0
  %v1417 = vmax.f32 %v1362, 0.0
  %v1418 = vmax.f32 %v1363, 0.0
  %v1419 = vmax.f32 %v1364, 0.0
  %v1420 = vmax.f32 %v1365, 0.0
  %v1421 = vmax.f32 %v1366, 0.0
  %v1422 = vmax.f32 %v1367, 0.0
  %v1423 = vmax.f32 %v1368, 0.0
  %v1424 = vmax.f32 %v1369, 0.0
  %v1425 = vmax.f32 %v1370, 0.0
  %v1426 = vmax.f32 %v1371, 0.0
  %v1427 = vmax.f32 %v1372, 0.0
  %v1428 = vmax.f32 %v1373, 0.0
  %v1429 = vmax.f32 %v1374, 0.0
  %v1430 = vmax.f32 %v1375, 0.0
  %v1431 = vmax.f32 %v1376, 0.0
  %v1432 = vmax.f32 %v1377, 0.0
  %v1433 = vmax.f32 %v1378, 0.0
  %v1434 = vmax.f32 %v1379, 0.0
  %v1435 = vmax.f32 %v1380, 0.0
  %v1436 = vmax.f32 %v1381, 0.0
  %v1437 = vmax.f32 %v1382, 0.0
  %v1438 = vmax.f32 %v1383, 0.0
  %v1439 = vmax.f32 %v1384, 0.0
  %v1440 = vmax.f32 %v1385, 0.0
  %v1441 = vmax.f32 %v1386, 0.0
  %v1442 = vmax.f32 %v1387, 0.0
  %v1443 = vmax.f32 %v1388, 0.0
  %v1444 = vmax.f32 %v1389, 0.0
  %v1445 = vmax.f32 %v1390, 0.0
  %v1446 = vmax.f32 %v1391, 0.0
  %v1447 = vmax.f32 %v1392, 0.0
  %1448 = vxpose.xlu0.b32.start [1/16] %v1393, 128
  %1449 = vxpose.xlu0.b32.cont [2/16] %v1394, 128
  %1450 = vxpose.xlu0.b32.cont [3/16] %v1395, 128
  %1451 = vxpose.xlu0.b32.cont [4/16] %v1396, 128
  %1452 = vxpose.xlu0.b32.cont [5/16] %v1397, 128
  %1453 = vxpose.xlu0.b32.cont [6/16] %v1398, 128
  %1454 = vxpose.xlu0.b32.cont [7/16] %v1399, 128
  %1455 = vxpose.xlu0.b32.cont [8/16] %v1400, 128
  %1456 = vxpose.xlu0.b32.cont [9/16] %v1401, 128
  %1457 = vxpose.xlu0.b32.cont [10/16] %v1402, 128
  %1458 = vxpose.xlu0.b32.cont [11/16] %v1403, 128
  %1459 = vxpose.xlu0.b32.cont [12/16] %v1404, 128
  %1460 = vxpose.xlu0.b32.cont [13/16] %v1405, 128
  %1461 = vxpose.xlu0.b32.cont [14/16] %v1406, 128
  %1462 = vxpose.xlu0.b32.cont [15/16] %v1407, 128
  %1463 = vxpose.xlu0.b32.end [16/16] %v1408, 128
  %v1464 = vpop.trf.xlu0
  %v1465 = vpop.trf.xlu0
  %v1466 = vpop.trf.xlu0
  %v1467 = vpop.trf.xlu0
  %v1468 = vpop.trf.xlu0
  %v1469 = vpop.trf.xlu0
  %v1470 = vpop.trf.xlu0
  %v1471 = vpop.trf.xlu0
  %v1472 = vpop.trf.xlu0
  %v1473 = vpop.trf.xlu0
  %v1474 = vpop.trf.xlu0
  %v1475 = vpop.trf.xlu0
  %v1476 = vpop.trf.xlu0
  %v1477 = vpop.trf.xlu0
  %v1478 = vpop.trf.xlu0
  %v1479 = vpop.trf.xlu0
  %1480 = vxpose.xlu0.b32.start [1/16] %v1409, 128
  %1481 = vxpose.xlu0.b32.cont [2/16] %v1410, 128
  %1482 = vxpose.xlu0.b32.cont [3/16] %v1411, 128
  %1483 = vxpose.xlu0.b32.cont [4/16] %v1412, 128
  %1484 = vxpose.xlu0.b32.cont [5/16] %v1413, 128
  %1485 = vxpose.xlu0.b32.cont [6/16] %v1414, 128
  %1486 = vxpose.xlu0.b32.cont [7/16] %v1415, 128
  %1487 = vxpose.xlu0.b32.cont [8/16] %v1416, 128
  %1488 = vxpose.xlu0.b32.cont [9/16] %v1417, 128
  %1489 = vxpose.xlu0.b32.cont [10/16] %v1418, 128
  %1490 = vxpose.xlu0.b32.cont [11/16] %v1419, 128
  %1491 = vxpose.xlu0.b32.cont [12/16] %v1420, 128
  %1492 = vxpose.xlu0.b32.cont [13/16] %v1421, 128
  %1493 = vxpose.xlu0.b32.cont [14/16] %v1422, 128
  %1494 = vxpose.xlu0.b32.cont [15/16] %v1423, 128
  %1495 = vxpose.xlu0.b32.end [16/16] %v1424, 128
  %v1496 = vpop.trf.xlu0
  %v1497 = vpop.trf.xlu0
  %v1498 = vpop.trf.xlu0
  %v1499 = vpop.trf.xlu0
  %v1500 = vpop.trf.xlu0
  %v1501 = vpop.trf.xlu0
  %v1502 = vpop.trf.xlu0
  %v1503 = vpop.trf.xlu0
  %v1504 = vpop.trf.xlu0
  %v1505 = vpop.trf.xlu0
  %v1506 = vpop.trf.xlu0
  %v1507 = vpop.trf.xlu0
  %v1508 = vpop.trf.xlu0
  %v1509 = vpop.trf.xlu0
  %v1510 = vpop.trf.xlu0
  %v1511 = vpop.trf.xlu0
  %1512 = vxpose.xlu0.b32.start [1/16] %v1425, 128
  %1513 = vxpose.xlu0.b32.cont [2/16] %v1426, 128
  %1514 = vxpose.xlu0.b32.cont [3/16] %v1427, 128
  %1515 = vxpose.xlu0.b32.cont [4/16] %v1428, 128
  %1516 = vxpose.xlu0.b32.cont [5/16] %v1429, 128
  %1517 = vxpose.xlu0.b32.cont [6/16] %v1430, 128
  %1518 = vxpose.xlu0.b32.cont [7/16] %v1431, 128
  %1519 = vxpose.xlu0.b32.cont [8/16] %v1432, 128
  %1520 = vxpose.xlu0.b32.cont [9/16] %v1433, 128
  %1521 = vxpose.xlu0.b32.cont [10/16] %v1434, 128
  %1522 = vxpose.xlu0.b32.cont [11/16] %v1435, 128
  %1523 = vxpose.xlu0.b32.cont [12/16] %v1436, 128
  %1524 = vxpose.xlu0.b32.cont [13/16] %v1437, 128
  %1525 = vxpose.xlu0.b32.cont [14/16] %v1438, 128
  %1526 = vxpose.xlu0.b32.cont [15/16] %v1439, 128
  %1527 = vxpose.xlu0.b32.end [16/16] %v1440, 128
  %v1528 = vpop.trf.xlu0
  %v1529 = vpop.trf.xlu0
  %v1530 = vpop.trf.xlu0
  %v1531 = vpop.trf.xlu0
  %v1532 = vpop.trf.xlu0
  %v1533 = vpop.trf.xlu0
  %v1534 = vpop.trf.xlu0
  %v1535 = vpop.trf.xlu0
  %v1536 = vpop.trf.xlu0
  %v1537 = vpop.trf.xlu0
  %v1538 = vpop.trf.xlu0
  %v1539 = vpop.trf.xlu0
  %v1540 = vpop.trf.xlu0
  %v1541 = vpop.trf.xlu0
  %v1542 = vpop.trf.xlu0
  %v1543 = vpop.trf.xlu0
  %1544 = vxpose.xlu0.b32.start [1/16] %v1441, 128
  %1545 = vxpose.xlu0.b32.cont [2/16] %v1442, 128
  %1546 = vxpose.xlu0.b32.cont [3/16] %v1443, 128
  %1547 = vxpose.xlu0.b32.cont [4/16] %v1444, 128
  %1548 = vxpose.xlu0.b32.cont [5/16] %v1445, 128
  %1549 = vxpose.xlu0.b32.cont [6/16] %v1446, 128
  %1550 = vxpose.xlu0.b32.cont [7/16] %v1447, 128
  %1551 = vxpose.xlu0.b32.cont [8/16] 0.0, 128
  %1552 = vxpose.xlu0.b32.cont [9/16] 0.0, 128
  %1553 = vxpose.xlu0.b32.cont [10/16] 0.0, 128
  %1554 = vxpose.xlu0.b32.cont [11/16] 0.0, 128
  %1555 = vxpose.xlu0.b32.cont [12/16] 0.0, 128
  %1556 = vxpose.xlu0.b32.cont [13/16] 0.0, 128
  %1557 = vxpose.xlu0.b32.cont [14/16] 0.0, 128
  %1558 = vxpose.xlu0.b32.cont [15/16] 0.0, 128
  %1559 = vxpose.xlu0.b32.end [16/16] 0.0, 128
  %v1560 = vpop.trf.xlu0
  %v1561 = vpop.trf.xlu0
  %v1562 = vpop.trf.xlu0
  %v1563 = vpop.trf.xlu0
  %v1564 = vpop.trf.xlu0
  %v1565 = vpop.trf.xlu0
  %v1566 = vpop.trf.xlu0
  %v1567 = vpop.trf.xlu0
  %v1568 = vpop.trf.xlu0
  %v1569 = vpop.trf.xlu0
  %v1570 = vpop.trf.xlu0
  %v1571 = vpop.trf.xlu0
  %v1572 = vpop.trf.xlu0
  %v1573 = vpop.trf.xlu0
  %v1574 = vpop.trf.xlu0
  %v1575 = vpop.trf.xlu0
  %v1577 = vsel %vm582, %v1560, 0
  %v1580 = vsel %vm582, %v1561, 0
  %v1583 = vsel %vm582, %v1562, 0
  %v1586 = vsel %vm582, %v1563, 0
  %v1589 = vsel %vm582, %v1564, 0
  %v1592 = vsel %vm582, %v1565, 0
  %v1595 = vsel %vm582, %v1566, 0
  %1597 = vmatprep.subr.mxu0 %v15
  %1598 = vmatpush1.xpose.msra.mxu0 %v14
  %1599 = vmatprep.subr.mxu0 %v19
  %1600 = vmatpush1.xpose.msra.mxu0 %v18
  %1601 = vmatprep.subr.mxu0 %v23
  %1602 = vmatpush1.xpose.msra.mxu0 %v22
  %1603 = vmatprep.subr.mxu0 %v27
  %1604 = vmatpush1.xpose.msra.mxu0 %v26
  %1605 = vmatprep.subr.mxu0 %v31
  %1606 = vmatpush1.xpose.msra.mxu0 %v30
  %1607 = vmatprep.subr.mxu0 %v35
  %1608 = vmatpush1.xpose.msra.mxu0 %v34
  %1609 = vmatprep.subr.mxu0 %v39
  %1610 = vmatpush1.xpose.msra.mxu0 %v38
  %1611 = vmatprep.subr.mxu0 %v43
  %1612 = vmatpush1.xpose.msra.mxu0 %v42
  %1613 = vmatprep.subr.mxu0 %v47
  %1614 = vmatpush1.xpose.msra.mxu0 %v46
  %1615 = vmatprep.subr.mxu0 %v51
  %1616 = vmatpush1.xpose.msra.mxu0 %v50
  %1617 = vmatprep.subr.mxu0 %v55
  %1618 = vmatpush1.xpose.msra.mxu0 %v54
  %1619 = vmatprep.subr.mxu0 %v59
  %1620 = vmatpush1.xpose.msra.mxu0 %v58
  %1621 = vmatprep.subr.mxu0 %v63
  %1622 = vmatpush1.xpose.msra.mxu0 %v62
  %1623 = vmatprep.subr.mxu0 %v67
  %1624 = vmatpush1.xpose.msra.mxu0 %v66
  %1625 = vmatprep.subr.mxu0 %v71
  %1626 = vmatpush1.xpose.msra.mxu0 %v70
  %1627 = vmatprep.subr.mxu0 %v75
  %1628 = vmatpush1.xpose.msra.mxu0 %v74
  %1629 = vmatprep.subr.mxu0 %v79
  %1630 = vmatpush1.xpose.msra.mxu0 %v78
  %1631 = vmatprep.subr.mxu0 %v83
  %1632 = vmatpush1.xpose.msra.mxu0 %v82
  %1633 = vmatprep.subr.mxu0 %v87
  %1634 = vmatpush1.xpose.msra.mxu0 %v86
  %1635 = vmatprep.subr.mxu0 %v91
  %1636 = vmatpush1.xpose.msra.mxu0 %v90
  %1637 = vmatprep.subr.mxu0 %v95
  %1638 = vmatpush1.xpose.msra.mxu0 %v94
  %1639 = vmatprep.subr.mxu0 %v99
  %1640 = vmatpush1.xpose.msra.mxu0 %v98
  %1641 = vmatprep.subr.mxu0 %v103
  %1642 = vmatpush1.xpose.msra.mxu0 %v102
  %1643 = vmatprep.subr.mxu0 %v107
  %1644 = vmatpush1.xpose.msra.mxu0 %v106
  %1645 = vmatprep.subr.mxu0 %v111
  %1646 = vmatpush1.xpose.msra.mxu0 %v110
  %1647 = vmatprep.subr.mxu0 %v115
  %1648 = vmatpush1.xpose.msra.mxu0 %v114
  %1649 = vmatprep.subr.mxu0 %v119
  %1650 = vmatpush1.xpose.msra.mxu0 %v118
  %1651 = vmatprep.subr.mxu0 %v123
  %1652 = vmatpush1.xpose.msra.mxu0 %v122
  %1653 = vmatprep.subr.mxu0 %v127
  %1654 = vmatpush1.xpose.msra.mxu0 %v126
  %1655 = vmatprep.subr.mxu0 %v131
  %1656 = vmatpush1.xpose.msra.mxu0 %v130
  %1657 = vmatprep.subr.mxu0 %v135
  %1658 = vmatpush1.xpose.msra.mxu0 %v134
  %1659 = vmatprep.subr.mxu0 %v139
  %1660 = vmatpush1.xpose.msra.mxu0 %v138
  %1661 = vmatprep.mubr.f32.mxu0 %v1496
  %1662 = vmatmul.mubr.f32.gmra.mrb[0].mxu0 %v1464
  %v1663 = vpop.f32.mrb[0].mxu0
  %v1664 = vadd.f32 0.0, %v1663
  %v1665 = vpop.f32.mrb[0].mxu0
  %v1666 = vadd.f32 0.0, %v1665
  %1667 = vmatprep.mubr.f32.mxu0 %v1497
  %1668 = vmatmul.mubr.f32.gmra.mrb[0].mxu0 %v1465
  %v1669 = vpop.f32.mrb[0].mxu0
  %v1670 = vadd.f32 0.0, %v1669
  %v1671 = vpop.f32.mrb[0].mxu0
  %v1672 = vadd.f32 0.0, %v1671
  %1673 = vmatprep.mubr.f32.mxu0 %v1498
  %1674 = vmatmul.mubr.f32.gmra.mrb[0].mxu0 %v1466
  %v1675 = vpop.f32.mrb[0].mxu0
  %v1676 = vadd.f32 0.0, %v1675
  %v1677 = vpop.f32.mrb[0].mxu0
  %v1678 = vadd.f32 0.0, %v1677
  %1679 = vmatprep.mubr.f32.mxu0 %v1499
  %1680 = vmatmul.mubr.f32.gmra.mrb[0].mxu0 %v1467
  %v1681 = vpop.f32.mrb[0].mxu0
  %v1682 = vadd.f32 0.0, %v1681
  %v1683 = vpop.f32.mrb[0].mxu0
  %v1684 = vadd.f32 0.0, %v1683
  %1685 = vmatprep.mubr.f32.mxu0 %v1500
  %1686 = vmatmul.mubr.f32.gmra.mrb[0].mxu0 %v1468
  %v1687 = vpop.f32.mrb[0].mxu0
  %v1688 = vadd.f32 0.0, %v1687
  %v1689 = vpop.f32.mrb[0].mxu0
  %v1690 = vadd.f32 0.0, %v1689
  %1691 = vmatprep.mubr.f32.mxu0 %v1501
  %1692 = vmatmul.mubr.f32.gmra.mrb[0].mxu0 %v1469
  %v1693 = vpop.f32.mrb[0].mxu0
  %v1694 = vadd.f32 0.0, %v1693
  %v1695 = vpop.f32.mrb[0].mxu0
  %v1696 = vadd.f32 0.0, %v1695
  %1697 = vmatprep.mubr.f32.mxu0 %v1502
  %1698 = vmatmul.mubr.f32.gmra.mrb[0].mxu0 %v1470
  %v1699 = vpop.f32.mrb[0].mxu0
  %v1700 = vadd.f32 0.0, %v1699
  %v1701 = vpop.f32.mrb[0].mxu0
  %v1702 = vadd.f32 0.0, %v1701
  %1703 = vdwg.mxu0
  %1704 = vmatprep.subr.mxu0 %v605
  %1705 = vmatpush1.xpose.msra.mxu0 %v16
  %1706 = vmatprep.subr.mxu0 %v608
  %1707 = vmatpush1.xpose.msra.mxu0 %v20
  %1708 = vmatprep.subr.mxu0 %v611
  %1709 = vmatpush1.xpose.msra.mxu0 %v24
  %1710 = vmatprep.subr.mxu0 %v614
  %1711 = vmatpush1.xpose.msra.mxu0 %v28
  %1712 = vmatprep.subr.mxu0 %v617
  %1713 = vmatpush1.xpose.msra.mxu0 %v32
  %1714 = vmatprep.subr.mxu0 %v620
  %1715 = vmatpush1.xpose.msra.mxu0 %v36
  %1716 = vmatprep.subr.mxu0 %v623
  %1717 = vmatpush1.xpose.msra.mxu0 %v40
  %1718 = vmatprep.subr.mxu0 %v626
  %1719 = vmatpush1.xpose.msra.mxu0 %v44
  %1720 = vmatprep.subr.mxu0 %v629
  %1721 = vmatpush1.xpose.msra.mxu0 %v48
  %1722 = vmatprep.subr.mxu0 %v632
  %1723 = vmatpush1.xpose.msra.mxu0 %v52
  %1724 = vmatprep.subr.mxu0 %v635
  %1725 = vmatpush1.xpose.msra.mxu0 %v56
  %1726 = vmatprep.subr.mxu0 %v638
  %1727 = vmatpush1.xpose.msra.mxu0 %v60
  %1728 = vmatprep.subr.mxu0 %v641
  %1729 = vmatpush1.xpose.msra.mxu0 %v64
  %1730 = vmatprep.subr.mxu0 %v644
  %1731 = vmatpush1.xpose.msra.mxu0 %v68
  %1732 = vmatprep.subr.mxu0 %v647
  %1733 = vmatpush1.xpose.msra.mxu0 %v72
  %1734 = vmatprep.subr.mxu0 %v650
  %1735 = vmatpush1.xpose.msra.mxu0 %v76
  %1736 = vmatprep.subr.mxu0 %v653
  %1737 = vmatpush1.xpose.msra.mxu0 %v80
  %1738 = vmatprep.subr.mxu0 %v656
  %1739 = vmatpush1.xpose.msra.mxu0 %v84
  %1740 = vmatprep.subr.mxu0 %v659
  %1741 = vmatpush1.xpose.msra.mxu0 %v88
  %1742 = vmatprep.subr.mxu0 %v662
  %1743 = vmatpush1.xpose.msra.mxu0 %v92
  %1744 = vmatprep.subr.mxu0 %v665
  %1745 = vmatpush1.xpose.msra.mxu0 %v96
  %1746 = vmatprep.subr.mxu0 %v668
  %1747 = vmatpush1.xpose.msra.mxu0 %v100
  %1748 = vmatprep.subr.mxu0 %v671
  %1749 = vmatpush1.xpose.msra.mxu0 %v104
  %1750 = vmatprep.subr.mxu0 %v674
  %1751 = vmatpush1.xpose.msra.mxu0 %v108
  %1752 = vmatprep.subr.mxu0 %v677
  %1753 = vmatpush1.xpose.msra.mxu0 %v112
  %1754 = vmatprep.subr.mxu0 %v680
  %1755 = vmatpush1.xpose.msra.mxu0 %v116
  %1756 = vmatprep.subr.mxu0 %v683
  %1757 = vmatpush1.xpose.msra.mxu0 %v120
  %1758 = vmatprep.subr.mxu0 %v686
  %1759 = vmatpush1.xpose.msra.mxu0 %v124
  %1760 = vmatprep.subr.mxu0 %v689
  %1761 = vmatpush1.xpose.msra.mxu0 %v128
  %1762 = vmatprep.subr.mxu0 %v692
  %1763 = vmatpush1.xpose.msra.mxu0 %v132
  %1764 = vmatprep.subr.mxu0 %v695
  %1765 = vmatpush1.xpose.msra.mxu0 %v136
  %1766 = vmatprep.subr.mxu0 %v698
  %1767 = vmatpush1.xpose.msra.mxu0 %v140
  %1768 = vmatprep.mubr.f32.mxu0 %v1577
  %1769 = vmatmul.mubr.f32.gmra.mrb[0].mxu0 %v1528
  %v1770 = vpop.f32.mrb[0].mxu0
  %v1771 = vadd.f32 %v1664, %v1770
  %v1772 = vpop.f32.mrb[0].mxu0
  %v1773 = vadd.f32 %v1666, %v1772
  %1774 = vmatprep.mubr.f32.mxu0 %v1580
  %1775 = vmatmul.mubr.f32.gmra.mrb[0].mxu0 %v1529
  %v1776 = vpop.f32.mrb[0].mxu0
  %v1777 = vadd.f32 %v1670, %v1776
  %v1778 = vpop.f32.mrb[0].mxu0
  %v1779 = vadd.f32 %v1672, %v1778
  %1780 = vmatprep.mubr.f32.mxu0 %v1583
  %1781 = vmatmul.mubr.f32.gmra.mrb[0].mxu0 %v1530
  %v1782 = vpop.f32.mrb[0].mxu0
  %v1783 = vadd.f32 %v1676, %v1782
  %v1784 = vpop.f32.mrb[0].mxu0
  %v1785 = vadd.f32 %v1678, %v1784
  %1786 = vmatprep.mubr.f32.mxu0 %v1586
  %1787 = vmatmul.mubr.f32.gmra.mrb[0].mxu0 %v1531
  %v1788 = vpop.f32.mrb[0].mxu0
  %v1789 = vadd.f32 %v1682, %v1788
  %v1790 = vpop.f32.mrb[0].mxu0
  %v1791 = vadd.f32 %v1684, %v1790
  %1792 = vmatprep.mubr.f32.mxu0 %v1589
  %1793 = vmatmul.mubr.f32.gmra.mrb[0].mxu0 %v1532
  %v1794 = vpop.f32.mrb[0].mxu0
  %v1795 = vadd.f32 %v1688, %v1794
  %v1796 = vpop.f32.mrb[0].mxu0
  %v1797 = vadd.f32 %v1690, %v1796
  %1798 = vmatprep.mubr.f32.mxu0 %v1592
  %1799 = vmatmul.mubr.f32.gmra.mrb[0].mxu0 %v1533
  %v1800 = vpop.f32.mrb[0].mxu0
  %v1801 = vadd.f32 %v1694, %v1800
  %v1802 = vpop.f32.mrb[0].mxu0
  %v1803 = vadd.f32 %v1696, %v1802
  %1804 = vmatprep.mubr.f32.mxu0 %v1595
  %1805 = vmatmul.mubr.f32.gmra.mrb[0].mxu0 %v1534
  %v1806 = vpop.f32.mrb[0].mxu0
  %v1807 = vadd.f32 %v1700, %v1806
  %v1808 = vpop.f32.mrb[0].mxu0
  %v1809 = vadd.f32 %v1702, %v1808
  %1810 = vdwg.mxu0
  %1811 = vmatprep.subr.mxu0 %v143
  %1812 = vmatpush1.xpose.msra.mxu0 %v142
  %1813 = vmatprep.subr.mxu0 %v147
  %1814 = vmatpush1.xpose.msra.mxu0 %v146
  %1815 = vmatprep.subr.mxu0 %v151
  %1816 = vmatpush1.xpose.msra.mxu0 %v150
  %1817 = vmatprep.subr.mxu0 %v155
  %1818 = vmatpush1.xpose.msra.mxu0 %v154
  %1819 = vmatprep.subr.mxu0 %v159
  %1820 = vmatpush1.xpose.msra.mxu0 %v158
  %1821 = vmatprep.subr.mxu0 %v163
  %1822 = vmatpush1.xpose.msra.mxu0 %v162
  %1823 = vmatprep.subr.mxu0 %v167
  %1824 = vmatpush1.xpose.msra.mxu0 %v166
  %1825 = vmatprep.subr.mxu0 %v171
  %1826 = vmatpush1.xpose.msra.mxu0 %v170
  %1827 = vmatprep.subr.mxu0 %v175
  %1828 = vmatpush1.xpose.msra.mxu0 %v174
  %1829 = vmatprep.subr.mxu0 %v179
  %1830 = vmatpush1.xpose.msra.mxu0 %v178
  %1831 = vmatprep.subr.mxu0 %v183
  %1832 = vmatpush1.xpose.msra.mxu0 %v182
  %1833 = vmatprep.subr.mxu0 %v187
  %1834 = vmatpush1.xpose.msra.mxu0 %v186
  %1835 = vmatprep.subr.mxu0 %v191
  %1836 = vmatpush1.xpose.msra.mxu0 %v190
  %1837 = vmatprep.subr.mxu0 %v195
  %1838 = vmatpush1.xpose.msra.mxu0 %v194
  %1839 = vmatprep.subr.mxu0 %v199
  %1840 = vmatpush1.xpose.msra.mxu0 %v198
  %1841 = vmatprep.subr.mxu0 %v203
  %1842 = vmatpush1.xpose.msra.mxu0 %v202
  %1843 = vmatprep.subr.mxu0 %v207
  %1844 = vmatpush1.xpose.msra.mxu0 %v206
  %1845 = vmatprep.subr.mxu0 %v211
  %1846 = vmatpush1.xpose.msra.mxu0 %v210
  %1847 = vmatprep.subr.mxu0 %v215
  %1848 = vmatpush1.xpose.msra.mxu0 %v214
  %1849 = vmatprep.subr.mxu0 %v219
  %1850 = vmatpush1.xpose.msra.mxu0 %v218
  %1851 = vmatprep.subr.mxu0 %v223
  %1852 = vmatpush1.xpose.msra.mxu0 %v222
  %1853 = vmatprep.subr.mxu0 %v227
  %1854 = vmatpush1.xpose.msra.mxu0 %v226
  %1855 = vmatprep.subr.mxu0 %v231
  %1856 = vmatpush1.xpose.msra.mxu0 %v230
  %1857 = vmatprep.subr.mxu0 0.0
  %1858 = vmatpush1.xpose.msra.mxu0 0.0
  %1859 = vmatprep.subr.mxu0 0.0
  %1860 = vmatpush1.xpose.msra.mxu0 0.0
  %1861 = vmatprep.subr.mxu0 0.0
  %1862 = vmatpush1.xpose.msra.mxu0 0.0
  %1863 = vmatprep.subr.mxu0 0.0
  %1864 = vmatpush1.xpose.msra.mxu0 0.0
  %1865 = vmatprep.subr.mxu0 0.0
  %1866 = vmatpush1.xpose.msra.mxu0 0.0
  %1867 = vmatprep.subr.mxu0 0.0
  %1868 = vmatpush1.xpose.msra.mxu0 0.0
  %1869 = vmatprep.subr.mxu0 0.0
  %1870 = vmatpush1.xpose.msra.mxu0 0.0
  %1871 = vmatprep.subr.mxu0 0.0
  %1872 = vmatpush1.xpose.msra.mxu0 0.0
  %1873 = vmatprep.subr.mxu0 0.0
  %1874 = vmatpush1.xpose.msra.mxu0 0.0
  %1875 = vmatprep.mubr.f32.mxu0 %v1496
  %1876 = vmatmul.mubr.f32.gmra.mrb[0].mxu0 %v1464
  %v1877 = vpop.f32.mrb[0].mxu0
  %v1878 = vadd.f32 0.0, %v1877
  %v1879 = vpop.f32.mrb[0].mxu0
  %v1880 = vadd.f32 0.0, %v1879
  %1881 = vmatprep.mubr.f32.mxu0 %v1497
  %1882 = vmatmul.mubr.f32.gmra.mrb[0].mxu0 %v1465
  %v1883 = vpop.f32.mrb[0].mxu0
  %v1884 = vadd.f32 0.0, %v1883
  %v1885 = vpop.f32.mrb[0].mxu0
  %v1886 = vadd.f32 0.0, %v1885
  %1887 = vmatprep.mubr.f32.mxu0 %v1498
  %1888 = vmatmul.mubr.f32.gmra.mrb[0].mxu0 %v1466
  %v1889 = vpop.f32.mrb[0].mxu0
  %v1890 = vadd.f32 0.0, %v1889
  %v1891 = vpop.f32.mrb[0].mxu0
  %v1892 = vadd.f32 0.0, %v1891
  %1893 = vmatprep.mubr.f32.mxu0 %v1499
  %1894 = vmatmul.mubr.f32.gmra.mrb[0].mxu0 %v1467
  %v1895 = vpop.f32.mrb[0].mxu0
  %v1896 = vadd.f32 0.0, %v1895
  %v1897 = vpop.f32.mrb[0].mxu0
  %v1898 = vadd.f32 0.0, %v1897
  %1899 = vmatprep.mubr.f32.mxu0 %v1500
  %1900 = vmatmul.mubr.f32.gmra.mrb[0].mxu0 %v1468
  %v1901 = vpop.f32.mrb[0].mxu0
  %v1902 = vadd.f32 0.0, %v1901
  %v1903 = vpop.f32.mrb[0].mxu0
  %v1904 = vadd.f32 0.0, %v1903
  %1905 = vmatprep.mubr.f32.mxu0 %v1501
  %1906 = vmatmul.mubr.f32.gmra.mrb[0].mxu0 %v1469
  %v1907 = vpop.f32.mrb[0].mxu0
  %v1908 = vadd.f32 0.0, %v1907
  %v1909 = vpop.f32.mrb[0].mxu0
  %v1910 = vadd.f32 0.0, %v1909
  %1911 = vmatprep.mubr.f32.mxu0 %v1502
  %1912 = vmatmul.mubr.f32.gmra.mrb[0].mxu0 %v1470
  %v1913 = vpop.f32.mrb[0].mxu0
  %v1914 = vadd.f32 0.0, %v1913
  %v1915 = vpop.f32.mrb[0].mxu0
  %v1916 = vadd.f32 0.0, %v1915
  %1917 = vdwg.mxu0
  %1918 = vmatprep.subr.mxu0 %v701
  %1919 = vmatpush1.xpose.msra.mxu0 %v144
  %1920 = vmatprep.subr.mxu0 %v704
  %1921 = vmatpush1.xpose.msra.mxu0 %v148
  %1922 = vmatprep.subr.mxu0 %v707
  %1923 = vmatpush1.xpose.msra.mxu0 %v152
  %1924 = vmatprep.subr.mxu0 %v710
  %1925 = vmatpush1.xpose.msra.mxu0 %v156
  %1926 = vmatprep.subr.mxu0 %v713
  %1927 = vmatpush1.xpose.msra.mxu0 %v160
  %1928 = vmatprep.subr.mxu0 %v716
  %1929 = vmatpush1.xpose.msra.mxu0 %v164
  %1930 = vmatprep.subr.mxu0 %v719
  %1931 = vmatpush1.xpose.msra.mxu0 %v168
  %1932 = vmatprep.subr.mxu0 %v722
  %1933 = vmatpush1.xpose.msra.mxu0 %v172
  %1934 = vmatprep.subr.mxu0 %v725
  %1935 = vmatpush1.xpose.msra.mxu0 %v176
  %1936 = vmatprep.subr.mxu0 %v728
  %1937 = vmatpush1.xpose.msra.mxu0 %v180
  %1938 = vmatprep.subr.mxu0 %v731
  %1939 = vmatpush1.xpose.msra.mxu0 %v184
  %1940 = vmatprep.subr.mxu0 %v734
  %1941 = vmatpush1.xpose.msra.mxu0 %v188
  %1942 = vmatprep.subr.mxu0 %v737
  %1943 = vmatpush1.xpose.msra.mxu0 %v192
  %1944 = vmatprep.subr.mxu0 %v740
  %1945 = vmatpush1.xpose.msra.mxu0 %v196
  %1946 = vmatprep.subr.mxu0 %v743
  %1947 = vmatpush1.xpose.msra.mxu0 %v200
  %1948 = vmatprep.subr.mxu0 %v746
  %1949 = vmatpush1.xpose.msra.mxu0 %v204
  %1950 = vmatprep.subr.mxu0 %v749
  %1951 = vmatpush1.xpose.msra.mxu0 %v208
  %1952 = vmatprep.subr.mxu0 %v752
  %1953 = vmatpush1.xpose.msra.mxu0 %v212
  %1954 = vmatprep.subr.mxu0 %v755
  %1955 = vmatpush1.xpose.msra.mxu0 %v216
  %1956 = vmatprep.subr.mxu0 %v758
  %1957 = vmatpush1.xpose.msra.mxu0 %v220
  %1958 = vmatprep.subr.mxu0 %v761
  %1959 = vmatpush1.xpose.msra.mxu0 %v224
  %1960 = vmatprep.subr.mxu0 %v764
  %1961 = vmatpush1.xpose.msra.mxu0 %v228
  %1962 = vmatprep.subr.mxu0 %v767
  %1963 = vmatpush1.xpose.msra.mxu0 %v232
  %1964 = vmatprep.subr.mxu0 0.0
  %1965 = vmatpush1.xpose.msra.mxu0 0.0
  %1966 = vmatprep.subr.mxu0 0.0
  %1967 = vmatpush1.xpose.msra.mxu0 0.0
  %1968 = vmatprep.subr.mxu0 0.0
  %1969 = vmatpush1.xpose.msra.mxu0 0.0
  %1970 = vmatprep.subr.mxu0 0.0
  %1971 = vmatpush1.xpose.msra.mxu0 0.0
  %1972 = vmatprep.subr.mxu0 0.0
  %1973 = vmatpush1.xpose.msra.mxu0 0.0
  %1974 = vmatprep.subr.mxu0 0.0
  %1975 = vmatpush1.xpose.msra.mxu0 0.0
  %1976 = vmatprep.subr.mxu0 0.0
  %1977 = vmatpush1.xpose.msra.mxu0 0.0
  %1978 = vmatprep.subr.mxu0 0.0
  %1979 = vmatpush1.xpose.msra.mxu0 0.0
  %1980 = vmatprep.subr.mxu0 0.0
  %1981 = vmatpush1.xpose.msra.mxu0 0.0
  %1982 = vmatprep.mubr.f32.mxu0 %v1577
  %1983 = vmatmul.mubr.f32.gmra.mrb[0].mxu0 %v1528
  %v1984 = vpop.f32.mrb[0].mxu0
  %v1985 = vadd.f32 %v1878, %v1984
  %v1986 = vpop.f32.mrb[0].mxu0
  %v1987 = vadd.f32 %v1880, %v1986
  %1988 = vmatprep.mubr.f32.mxu0 %v1580
  %1989 = vmatmul.mubr.f32.gmra.mrb[0].mxu0 %v1529
  %v1990 = vpop.f32.mrb[0].mxu0
  %v1991 = vadd.f32 %v1884, %v1990
  %v1992 = vpop.f32.mrb[0].mxu0
  %v1993 = vadd.f32 %v1886, %v1992
  %1994 = vmatprep.mubr.f32.mxu0 %v1583
  %1995 = vmatmul.mubr.f32.gmra.mrb[0].mxu0 %v1530
  %v1996 = vpop.f32.mrb[0].mxu0
  %v1997 = vadd.f32 %v1890, %v1996
  %v1998 = vpop.f32.mrb[0].mxu0
  %v1999 = vadd.f32 %v1892, %v1998
  %2000 = vmatprep.mubr.f32.mxu0 %v1586
  %2001 = vmatmul.mubr.f32.gmra.mrb[0].mxu0 %v1531
  %v2002 = vpop.f32.mrb[0].mxu0
  %v2003 = vadd.f32 %v1896, %v2002
  %v2004 = vpop.f32.mrb[0].mxu0
  %v2005 = vadd.f32 %v1898, %v2004
  %2006 = vmatprep.mubr.f32.mxu0 %v1589
  %2007 = vmatmul.mubr.f32.gmra.mrb[0].mxu0 %v1532
  %v2008 = vpop.f32.mrb[0].mxu0
  %v2009 = vadd.f32 %v1902, %v2008
  %v2010 = vpop.f32.mrb[0].mxu0
  %v2011 = vadd.f32 %v1904, %v2010
  %2012 = vmatprep.mubr.f32.mxu0 %v1592
  %2013 = vmatmul.mubr.f32.gmra.mrb[0].mxu0 %v1533
  %v2014 = vpop.f32.mrb[0].mxu0
  %v2015 = vadd.f32 %v1908, %v2014
  %v2016 = vpop.f32.mrb[0].mxu0
  %v2017 = vadd.f32 %v1910, %v2016
  %2018 = vmatprep.mubr.f32.mxu0 %v1595
  %2019 = vmatmul.mubr.f32.gmra.mrb[0].mxu0 %v1534
  %v2020 = vpop.f32.mrb[0].mxu0
  %v2021 = vadd.f32 %v1914, %v2020
  %v2022 = vpop.f32.mrb[0].mxu0
  %v2023 = vadd.f32 %v1916, %v2022
  %2024 = vdwg.mxu0
  %s2025 = scalar_lea.vmem %s3, 224
  %2026 = vst [vmem:[%s2025] sm:$0xff] %v1771
  %2027 = vst [vmem:[%s2025 + $0x8] sm:$0xff] %v1773
  %2028 = vst [vmem:[%s2025 + $0x10] sm:$0xff] %v1985
  %2029 = vst.msk [vmem:[%s2025 + $0x18] sm:$0xff] %vm582, %v1987
  %2030 = vst [vmem:[%s2025 + $0x20] sm:$0xff] %v1777
  %2031 = vst [vmem:[%s2025 + $0x28] sm:$0xff] %v1779
  %2032 = vst [vmem:[%s2025 + $0x30] sm:$0xff] %v1991
  %2033 = vst.msk [vmem:[%s2025 + $0x38] sm:$0xff] %vm582, %v1993
  %2034 = vst [vmem:[%s2025 + $0x40] sm:$0xff] %v1783
  %2035 = vst [vmem:[%s2025 + $0x48] sm:$0xff] %v1785
  %2036 = vst [vmem:[%s2025 + $0x50] sm:$0xff] %v1997
  %2037 = vst.msk [vmem:[%s2025 + $0x58] sm:$0xff] %vm582, %v1999
  %2038 = vst [vmem:[%s2025 + $0x60] sm:$0xff] %v1789
  %2039 = vst [vmem:[%s2025 + $0x68] sm:$0xff] %v1791
  %2040 = vst [vmem:[%s2025 + $0x70] sm:$0xff] %v2003
  %2041 = vst.msk [vmem:[%s2025 + $0x78] sm:$0xff] %vm582, %v2005
  %2042 = vst [vmem:[%s2025 + $0x80] sm:$0xff] %v1795
  %2043 = vst [vmem:[%s2025 + $0x88] sm:$0xff] %v1797
  %2044 = vst [vmem:[%s2025 + $0x90] sm:$0xff] %v2009
  %2045 = vst.msk [vmem:[%s2025 + $0x98] sm:$0xff] %vm582, %v2011
  %2046 = vst [vmem:[%s2025 + $0xa0] sm:$0xff] %v1801
  %2047 = vst [vmem:[%s2025 + $0xa8] sm:$0xff] %v1803
  %2048 = vst [vmem:[%s2025 + $0xb0] sm:$0xff] %v2015
  %2049 = vst.msk [vmem:[%s2025 + $0xb8] sm:$0xff] %vm582, %v2017
  %2050 = vst [vmem:[%s2025 + $0xc0] sm:$0x1] %v1807
  %2051 = vst [vmem:[%s2025 + $0xc8] sm:$0x1] %v1809
  %2052 = vst [vmem:[%s2025 + $0xd0] sm:$0x1] %v2021
  %2053 = vst.msk [vmem:[%s2025 + $0xd8] sm:$0x1] %vm1224, %v2023
  // Predicated region
  $region14: #{tpu_custom_call.1} parent=0 // pred_check
    _
  $region15: #{tpu_custom_call.1} parent=0 // pred_check_branch
    %2055 = sbr.rel (0) target = $region17
  $region16: #{tpu_custom_call.1} parent=0 // pred_region
    _
  $region17: #{tpu_custom_call.1} parent=0 // pred_fallthru
    _
  // Predicated region
  $region18: #{tpu_custom_call.1} parent=0 // pred_check
    _
  $region19: #{tpu_custom_call.1} parent=0 // pred_check_branch
    %2057 = sbr.rel (0) target = $region21
  $region20: #{tpu_custom_call.1} parent=0 // pred_region
    _
  $region21: #{tpu_custom_call.1} parent=0 // pred_fallthru
    _

</llo_original>
